<compile_context>
chip_gen: v7x
topology: tpu7x:2x2x1
jax: 0.10.0
libtpu: 0.0.40
codegen_flags: <defaults>
</compile_context>

<pallas_src>
import functools
import string

import jax
import jax.numpy as jnp
from jax.experimental import pallas as pl
from jax.experimental.pallas import tpu as pltpu


# ------------------------------ fused Pallas kernel ------------------------------

def _word_embedding_kernel(x_ref, w_ref, o_ref, hsf_ref, hsb_ref,
                           *, T, B, E, C, H, OUT):
    f32 = jnp.float32
    bf16 = jnp.bfloat16
    H2, H4, H8 = 2 * H, 4 * H, 8 * H

    # Static row offsets into the packed parameter buffer (see pack_params).
    r_enc_w = 0
    r_wih = r_enc_w + E
    r_whh_f = r_wih + C
    r_whh_b = r_whh_f + H
    r_emb_w = r_whh_b + H
    r_enc_b = r_emb_w + H2
    r_ball = r_enc_b + 1
    r_emb_b = r_ball + 1

    # One-time weight loads, hoisted out of every loop.  Matmul operands in
    # bf16 (f32 accumulate); biases and element-wise math in f32.
    enc_w = w_ref[r_enc_w:r_enc_w + E, 0:C].astype(bf16)        # (E, C)
    wih = w_ref[r_wih:r_wih + C, 0:H8].astype(bf16)             # (C, 8H)  [fwd i,f,g,o | bwd i,f,g,o]
    whh_f = w_ref[r_whh_f:r_whh_f + H, 0:H4].astype(bf16)       # (H, 4H)
    whh_b = w_ref[r_whh_b:r_whh_b + H, 0:H4].astype(bf16)       # (H, 4H)
    w_top = w_ref[r_emb_w:r_emb_w + H, 0:OUT].astype(bf16)      # output Linear, fwd half
    w_bot = w_ref[r_emb_w + H:r_emb_w + H2, 0:OUT].astype(bf16)  # output Linear, bwd half
    enc_b = w_ref[r_enc_b:r_enc_b + 1, 0:C]                     # f32 biases
    b_all = w_ref[r_ball:r_ball + 1, 0:H8]
    emb_b = w_ref[r_emb_b:r_emb_b + 1, 0:OUT]

    # ---- char encoder: Linear + ReLU over all T*B rows in one MXU pass ----
    cv = jnp.dot(x_ref[...].astype(bf16), enc_w, preferred_element_type=f32)
    cv = jnp.maximum(cv + enc_b, 0.0)                            # (T*B, C) f32

    # ---- LSTM input projections for all timesteps & both directions (+bias) ----
    gx = jnp.dot(cv.astype(bf16), wih, preferred_element_type=f32) + b_all   # (T*B, 8H) f32
    gx_f = gx[:, 0:H4]                                           # fwd gate inputs
    gx_b = gx[:, H4:H8]                                          # bwd gate inputs

    def cell(h, c, g_in, whh):
        # ONE (B,H)@(H,4H) matmul per direction per step; ONE full-width
        # sigmoid + ONE full-width tanh (2 EUP pushes); 32-lane gate slices
        # go to the XLU slot.  Cell-state math stays f32.
        z = g_in + jnp.dot(h.astype(bf16), whh, preferred_element_type=f32)  # (B, 4H) f32
        sg = jax.nn.sigmoid(z)
        th = jnp.tanh(z)
        i = sg[:, 0:H]                      # PyTorch gate order [i | f | g | o]
        f = sg[:, H:2 * H]
        g = th[:, 2 * H:3 * H]
        o = sg[:, 3 * H:H4]
        c_new = f * c + i * g
        h_new = o * jnp.tanh(c_new)
        return h_new, c_new

    zeros = jnp.zeros((B, H), f32)
    h_f, c_f = zeros, zeros
    h_b, c_b = zeros, zeros

    # Time loop fully unrolled at trace time (T is small & static); fwd and
    # bwd steps are mutually independent so the scheduler interleaves their
    # MXU / EUP / VPU work.  Per-step hidden states are parked in VMEM
    # scratch (vst slot is idle during the recurrence, stores are off the
    # serial dependency chain) so the output Linear below collapses to one
    # matmul per direction.
    for t in range(T):
        h_f, c_f = cell(h_f, c_f, gx_f[t * B:(t + 1) * B, :], whh_f)
        hsf_ref[t * B:(t + 1) * B, :] = h_f
        tr = T - 1 - t                      # reversed-time backward pass
        h_b, c_b = cell(h_b, c_b, gx_b[tr * B:(tr + 1) * B, :], whh_b)
        hsb_ref[tr * B:(tr + 1) * B, :] = h_b

    # ---- output embedding Linear: 2 matmuls + ONE contiguous 2-D store ----
    y = (jnp.dot(hsf_ref[...].astype(bf16), w_top, preferred_element_type=f32)
         + jnp.dot(hsb_ref[...].astype(bf16), w_bot, preferred_element_type=f32)
         + emb_b)                                                # (T*B, OUT) f32
    o_ref[...] = y.astype(o_ref.dtype)


def fused_word_embedding(x2d, wpk, *, T, B, E, C, H, OUT):
    kernel = functools.partial(_word_embedding_kernel,
                               T=T, B=B, E=E, C=C, H=H, OUT=OUT)
    # Gridless call: single invocation, whole (tiny) operands resident in
    # VMEM, no pipeline steps and no double-buffering of the inputs.
    # TODO(synk): at production sizes (B~512, H=256) expose B as a "parallel"
    # grid axis (v7x: 2 TensorCores), tile gx per timestep to fit v7x's
    # 64 MiB VMEM, and set vmem_limit_bytes explicitly.
    return pl.pallas_call(
        kernel,
        out_shape=jax.ShapeDtypeStruct((T * B, OUT), jnp.float32),
        in_specs=[pl.BlockSpec(memory_space=pltpu.MemorySpace.VMEM),
                  pl.BlockSpec(memory_space=pltpu.MemorySpace.VMEM)],
        out_specs=pl.BlockSpec(memory_space=pltpu.MemorySpace.VMEM),
        scratch_shapes=[pltpu.VMEM((T * B, H), jnp.float32),
                        pltpu.VMEM((T * B, H), jnp.float32)],
    )(x2d, wpk)


# ------------------------------ parameter packing ------------------------------

def init_params(key, vocab, E, C, H, out_ch):
    ks = jax.random.split(key, 11)
    s = 0.1
    p = {
        'emb':   jax.random.normal(ks[0], (vocab, E)) * s,       # char_embedding table
        'enc_w': jax.random.normal(ks[1], (E, C)) * s,           # char_encoder Linear (x @ w)
        'enc_b': jax.random.normal(ks[2], (1, C)) * s,
        'wih_f': jax.random.normal(ks[3], (C, 4 * H)) * s,       # LSTM fwd W_ih^T  [i|f|g|o]
        'whh_f': jax.random.normal(ks[4], (H, 4 * H)) * s,       # LSTM fwd W_hh^T
        'b_f':   jax.random.normal(ks[5], (1, 4 * H)) * s,       # b_ih + b_hh (combined)
        'wih_b': jax.random.normal(ks[6], (C, 4 * H)) * s,       # LSTM bwd
        'whh_b': jax.random.normal(ks[7], (H, 4 * H)) * s,
        'b_b':   jax.random.normal(ks[8], (1, 4 * H)) * s,
        'emb_w': jax.random.normal(ks[9], (2 * H, out_ch)) * s,  # output embedding Linear
        'emb_b': jax.random.normal(ks[10], (1, out_ch)) * s,
    }
    return jax.tree.map(lambda a: a.astype(jnp.float32), p)


def pack_params(params):
    # Pack every kernel-side weight/bias into ONE f32 buffer, once, at init
    # time (a single DMA + BlockSpec instead of nine, and no per-call
    # concat/stack in the jitted forward).
    E, C = params['enc_w'].shape
    H = params['whh_f'].shape[0]
    OUT = params['emb_w'].shape[1]
    width = max(C, 8 * H, OUT)

    def pad_w(a):
        return jnp.pad(a, ((0, 0), (0, width - a.shape[1])))

    wih_all = jnp.concatenate([params['wih_f'], params['wih_b']], axis=1)   # (C, 8H)
    b_all = jnp.concatenate([params['b_f'], params['b_b']], axis=1)         # (1, 8H)
    wpk = jnp.concatenate([
        pad_w(params['enc_w']),       # rows [0, E)
        pad_w(wih_all),               # rows [E, E+C)
        pad_w(params['whh_f']),       # rows [E+C, E+C+H)
        pad_w(params['whh_b']),       # next H rows
        pad_w(params['emb_w']),       # next 2H rows
        pad_w(params['enc_b']),       # 1 row
        pad_w(b_all),                 # 1 row
        pad_w(params['emb_b']),       # 1 row
    ], axis=0).astype(jnp.float32)
    return wpk, (E, C, H, OUT)


# ------------------------------ JAX glue code ------------------------------

def _interp_weights(lengths, T, Lmax):
    # (B, T, Lmax) row-resize weights reproducing F.interpolate(...,
    # mode='bilinear', align_corners=True) from (L, E) to (T, E); the E axis
    # is identity.  Built from traced lengths so retracing depends only on
    # the padded shapes, not on individual word lengths.
    Lf = jnp.maximum(lengths.astype(jnp.float32), 1.0)[:, None]        # (B, 1), guard L>=1
    if T == 1:
        src = jnp.zeros((lengths.shape[0], 1), jnp.float32)
    else:
        t = jnp.arange(T, dtype=jnp.float32)[None, :]                  # (1, T)
        src = t * (Lf - 1.0) / float(T - 1)                            # (B, T)
    lo = jnp.clip(jnp.floor(src), 0.0, Lf - 1.0)
    hi = jnp.minimum(lo + 1.0, Lf - 1.0)
    w = src - lo
    pos = jnp.arange(Lmax, dtype=jnp.float32)[None, None, :]           # (1, 1, Lmax)
    M = ((pos == lo[..., None]).astype(jnp.float32) * (1.0 - w)[..., None]
         + (pos == hi[..., None]).astype(jnp.float32) * w[..., None])
    return M                                                           # (B, T, Lmax)


@functools.partial(jax.jit, static_argnames=("max_length", "dims"))
def _forward_padded(emb_table, wpk, idx, lengths, max_length, dims):
    T = max_length
    E, C, H, OUT = dims
    B, Lmax = idx.shape

    # TODO(synk): the char-index gather + length-dependent interpolation
    # weights stay in plain JAX (ONE batched gather + ONE einsum) because the
    # per-word lengths are data-dependent; everything downstream is one fused
    # Pallas kernel.
    emb_g = jnp.take(emb_table, idx, axis=0)                           # (B, Lmax, E)
    M = _interp_weights(lengths, T, Lmax)                              # (B, T, Lmax)
    x = jnp.einsum('btl,ble->tbe', M, emb_g)                           # (T, B, E) time-major
    x2d = x.reshape(T * B, E)                                          # row = t*B + b

    y2d = fused_word_embedding(x2d, wpk, T=T, B=B, E=E, C=C, H=H, OUT=OUT)  # (T*B, OUT)
    # Kernel emits a single contiguous 2-D slab; recover (B, T, OUT) here.
    return y2d.reshape(T, B, OUT).transpose(1, 0, 2)


def word_embedding_forward(emb_table, wpk, dims, words, max_length):
    # words: list of int32 index arrays (variable length), values in [0, vocab)
    lengths = [int(w.shape[0]) for w in words]
    Lmax = max(lengths)
    idx = jnp.stack([jnp.pad(w, (0, Lmax - l)) for w, l in zip(words, lengths)])  # (B, Lmax)
    len_arr = jnp.asarray(lengths, dtype=jnp.int32)
    return _forward_padded(emb_table, wpk, idx, len_arr, max_length=max_length, dims=dims)


if __name__ == "__main__":
    key = jax.random.PRNGKey(0)
    lexicon = string.ascii_lowercase + string.digits
    VOCAB = len(lexicon)   # 36
    E = 32                 # embedding_dim (scaled down from 300)
    C = 32                 # char_vector_dim (scaled down from 256)
    H = 32                 # LSTM hidden (scaled down from 256)
    OUT = 32               # out_channels (scaled down from 512)
    MAXLEN = 10            # max_length

    pkey, k1, k2 = jax.random.split(key, 3)
    params = init_params(pkey, VOCAB, E, C, H, OUT)
    wpk, dims = pack_params(params)        # packed ONCE, outside the jitted forward

    # batch of 2 words with different character lengths
    word0 = jax.random.randint(k1, (5,), 0, VOCAB, dtype=jnp.int32)
    word1 = jax.random.randint(k2, (7,), 0, VOCAB, dtype=jnp.int32)
    words = [word0, word1]

    out = word_embedding_forward(params['emb'], wpk, dims, words, MAXLEN)
    out = jax.block_until_ready(out)

    assert out.shape == (2, MAXLEN, OUT), out.shape
    assert bool(jnp.all(jnp.isfinite(out)))
    print("KERNEL_OK")
</pallas_src>

<mosaic_0001>
module attributes {stable_mosaic.version = 11 : i64} {
  func.func @_word_embedding_kernel(%arg0: memref<20x32xf32, #tpu.memory_space<vmem>>, %arg1: memref<195x256xf32, #tpu.memory_space<vmem>>, %arg2: memref<20x32xf32, #tpu.memory_space<vmem>>, %arg3: memref<20x32xf32, #tpu.memory_space<vmem>>, %arg4: memref<20x32xf32, #tpu.memory_space<vmem>>) attributes {dimension_semantics = [], scalar_prefetch = 0 : i64, scratch_operands = 2 : i64, tpu.core_type = #tpu.core_type<tc>} {
    %c0 = arith.constant 0 : index
    %c0_0 = arith.constant 0 : index
    %0 = vector.load %arg1[%c0, %c0_0] : memref<195x256xf32, #tpu.memory_space<vmem>>, vector<32x32xf32>
    %1 = arith.truncf %0 : vector<32x32xf32> to vector<32x32xbf16>
    %c32 = arith.constant 32 : index
    %c0_1 = arith.constant 0 : index
    %2 = vector.load %arg1[%c32, %c0_1] : memref<195x256xf32, #tpu.memory_space<vmem>>, vector<32x256xf32>
    %3 = arith.truncf %2 : vector<32x256xf32> to vector<32x256xbf16>
    %c64 = arith.constant 64 : index
    %c0_2 = arith.constant 0 : index
    %4 = vector.load %arg1[%c64, %c0_2] : memref<195x256xf32, #tpu.memory_space<vmem>>, vector<32x128xf32>
    %5 = arith.truncf %4 : vector<32x128xf32> to vector<32x128xbf16>
    %c96 = arith.constant 96 : index
    %c0_3 = arith.constant 0 : index
    %6 = vector.load %arg1[%c96, %c0_3] : memref<195x256xf32, #tpu.memory_space<vmem>>, vector<32x128xf32>
    %7 = arith.truncf %6 : vector<32x128xf32> to vector<32x128xbf16>
    %c128 = arith.constant 128 : index
    %c0_4 = arith.constant 0 : index
    %8 = vector.load %arg1[%c128, %c0_4] : memref<195x256xf32, #tpu.memory_space<vmem>>, vector<32x32xf32>
    %9 = arith.truncf %8 : vector<32x32xf32> to vector<32x32xbf16>
    %c160 = arith.constant 160 : index
    %c0_5 = arith.constant 0 : index
    %10 = vector.load %arg1[%c160, %c0_5] : memref<195x256xf32, #tpu.memory_space<vmem>>, vector<32x32xf32>
    %11 = arith.truncf %10 : vector<32x32xf32> to vector<32x32xbf16>
    %c192 = arith.constant 192 : index
    %c0_6 = arith.constant 0 : index
    %12 = vector.load %arg1[%c192, %c0_6] : memref<195x256xf32, #tpu.memory_space<vmem>>, vector<1x32xf32>
    %c193 = arith.constant 193 : index
    %c0_7 = arith.constant 0 : index
    %13 = vector.load %arg1[%c193, %c0_7] : memref<195x256xf32, #tpu.memory_space<vmem>>, vector<1x256xf32>
    %c194 = arith.constant 194 : index
    %c0_8 = arith.constant 0 : index
    %14 = vector.load %arg1[%c194, %c0_8] : memref<195x256xf32, #tpu.memory_space<vmem>>, vector<1x32xf32>
    %c0_9 = arith.constant 0 : index
    %c0_10 = arith.constant 0 : index
    %15 = vector.load %arg0[%c0_9, %c0_10] : memref<20x32xf32, #tpu.memory_space<vmem>>, vector<20x32xf32>
    %16 = arith.truncf %15 : vector<20x32xf32> to vector<20x32xbf16>
    %cst = arith.constant dense<0.000000e+00> : vector<20x32xf32>
    %17 = tpu.matmul %16, %1, %cst {dimension_numbers = #tpu.dot_dimension_numbers<[1], [0], [0], [1], [0, 0, 1, 1], [], []>} : vector<20x32xbf16>, vector<32x32xbf16>, vector<20x32xf32> -> vector<20x32xf32>
    %18 = vector.broadcast %12 : vector<1x32xf32> to vector<20x32xf32>
    %19 = arith.addf %17, %18 : vector<20x32xf32>
    %cst_11 = arith.constant 0.000000e+00 : f32
    %20 = vector.broadcast %cst_11 : f32 to vector<20x32xf32>
    %21 = arith.maximumf %19, %20 : vector<20x32xf32>
    %22 = arith.truncf %21 : vector<20x32xf32> to vector<20x32xbf16>
    %cst_12 = arith.constant dense<0.000000e+00> : vector<20x256xf32>
    %23 = tpu.matmul %22, %3, %cst_12 {dimension_numbers = #tpu.dot_dimension_numbers<[1], [0], [0], [1], [0, 0, 1, 1], [], []>} : vector<20x32xbf16>, vector<32x256xbf16>, vector<20x256xf32> -> vector<20x256xf32>
    %24 = vector.broadcast %13 : vector<1x256xf32> to vector<20x256xf32>
    %25 = arith.addf %23, %24 : vector<20x256xf32>
    %26 = vector.extract_strided_slice %25 {offsets = [0, 0], sizes = [20, 128], strides = [1, 1]} : vector<20x256xf32> to vector<20x128xf32>
    %27 = vector.extract_strided_slice %25 {offsets = [0, 128], sizes = [20, 128], strides = [1, 1]} : vector<20x256xf32> to vector<20x128xf32>
    %cst_13 = arith.constant 0.000000e+00 : f32
    %28 = vector.broadcast %cst_13 : f32 to vector<2x32xf32>
    %29 = vector.extract_strided_slice %26 {offsets = [0, 0], sizes = [2, 128], strides = [1, 1]} : vector<20x128xf32> to vector<2x128xf32>
    %30 = arith.truncf %28 : vector<2x32xf32> to vector<2x32xbf16>
    %cst_14 = arith.constant dense<0.000000e+00> : vector<2x128xf32>
    %31 = tpu.matmul %30, %5, %cst_14 {dimension_numbers = #tpu.dot_dimension_numbers<[1], [0], [0], [1], [0, 0, 1, 1], [], []>} : vector<2x32xbf16>, vector<32x128xbf16>, vector<2x128xf32> -> vector<2x128xf32>
    %32 = arith.addf %29, %31 : vector<2x128xf32>
    %33 = arith.negf %32 : vector<2x128xf32>
    %34 = math.exp %33 : vector<2x128xf32>
    %cst_15 = arith.constant 1.000000e+00 : f32
    %35 = vector.broadcast %cst_15 : f32 to vector<2x128xf32>
    %36 = arith.addf %35, %34 : vector<2x128xf32>
    %37 = arith.divf %35, %36 : vector<2x128xf32>
    %38 = math.tanh %32 : vector<2x128xf32>
    %39 = vector.extract_strided_slice %37 {offsets = [0, 0], sizes = [2, 32], strides = [1, 1]} : vector<2x128xf32> to vector<2x32xf32>
    %40 = vector.extract_strided_slice %37 {offsets = [0, 32], sizes = [2, 32], strides = [1, 1]} : vector<2x128xf32> to vector<2x32xf32>
    %41 = vector.extract_strided_slice %38 {offsets = [0, 64], sizes = [2, 32], strides = [1, 1]} : vector<2x128xf32> to vector<2x32xf32>
    %42 = vector.extract_strided_slice %37 {offsets = [0, 96], sizes = [2, 32], strides = [1, 1]} : vector<2x128xf32> to vector<2x32xf32>
    %43 = arith.mulf %40, %28 : vector<2x32xf32>
    %44 = arith.mulf %39, %41 : vector<2x32xf32>
    %45 = arith.addf %43, %44 : vector<2x32xf32>
    %46 = math.tanh %45 : vector<2x32xf32>
    %47 = arith.mulf %42, %46 : vector<2x32xf32>
    %c0_16 = arith.constant 0 : index
    %c0_17 = arith.constant 0 : index
    %48 = vector.load %arg3[%c0_16, %c0_17] : memref<20x32xf32, #tpu.memory_space<vmem>>, vector<2x32xf32>
    tpu.vector_store %arg3[%c0_16, %c0_17], %47 {strides = array<i32>} : memref<20x32xf32, #tpu.memory_space<vmem>>, vector<2x32xf32>,
    %49 = vector.extract_strided_slice %27 {offsets = [18, 0], sizes = [2, 128], strides = [1, 1]} : vector<20x128xf32> to vector<2x128xf32>
    %50 = arith.truncf %28 : vector<2x32xf32> to vector<2x32xbf16>
    %cst_18 = arith.constant dense<0.000000e+00> : vector<2x128xf32>
    %51 = tpu.matmul %50, %7, %cst_18 {dimension_numbers = #tpu.dot_dimension_numbers<[1], [0], [0], [1], [0, 0, 1, 1], [], []>} : vector<2x32xbf16>, vector<32x128xbf16>, vector<2x128xf32> -> vector<2x128xf32>
    %52 = arith.addf %49, %51 : vector<2x128xf32>
    %53 = arith.negf %52 : vector<2x128xf32>
    %54 = math.exp %53 : vector<2x128xf32>
    %cst_19 = arith.constant 1.000000e+00 : f32
    %55 = vector.broadcast %cst_19 : f32 to vector<2x128xf32>
    %56 = arith.addf %55, %54 : vector<2x128xf32>
    %57 = arith.divf %55, %56 : vector<2x128xf32>
    %58 = math.tanh %52 : vector<2x128xf32>
    %59 = vector.extract_strided_slice %57 {offsets = [0, 0], sizes = [2, 32], strides = [1, 1]} : vector<2x128xf32> to vector<2x32xf32>
    %60 = vector.extract_strided_slice %57 {offsets = [0, 32], sizes = [2, 32], strides = [1, 1]} : vector<2x128xf32> to vector<2x32xf32>
    %61 = vector.extract_strided_slice %58 {offsets = [0, 64], sizes = [2, 32], strides = [1, 1]} : vector<2x128xf32> to vector<2x32xf32>
    %62 = vector.extract_strided_slice %57 {offsets = [0, 96], sizes = [2, 32], strides = [1, 1]} : vector<2x128xf32> to vector<2x32xf32>
    %63 = arith.mulf %60, %28 : vector<2x32xf32>
    %64 = arith.mulf %59, %61 : vector<2x32xf32>
    %65 = arith.addf %63, %64 : vector<2x32xf32>
    %66 = math.tanh %65 : vector<2x32xf32>
    %67 = arith.mulf %62, %66 : vector<2x32xf32>
    %c18 = arith.constant 18 : index
    %c0_20 = arith.constant 0 : index
    %68 = vector.load %arg4[%c18, %c0_20] : memref<20x32xf32, #tpu.memory_space<vmem>>, vector<2x32xf32>
    tpu.vector_store %arg4[%c18, %c0_20], %67 {strides = array<i32>} : memref<20x32xf32, #tpu.memory_space<vmem>>, vector<2x32xf32>,
    %69 = vector.extract_strided_slice %26 {offsets = [2, 0], sizes = [2, 128], strides = [1, 1]} : vector<20x128xf32> to vector<2x128xf32>
    %70 = arith.truncf %47 : vector<2x32xf32> to vector<2x32xbf16>
    %cst_21 = arith.constant dense<0.000000e+00> : vector<2x128xf32>
    %71 = tpu.matmul %70, %5, %cst_21 {dimension_numbers = #tpu.dot_dimension_numbers<[1], [0], [0], [1], [0, 0, 1, 1], [], []>} : vector<2x32xbf16>, vector<32x128xbf16>, vector<2x128xf32> -> vector<2x128xf32>
    %72 = arith.addf %69, %71 : vector<2x128xf32>
    %73 = arith.negf %72 : vector<2x128xf32>
    %74 = math.exp %73 : vector<2x128xf32>
    %cst_22 = arith.constant 1.000000e+00 : f32
    %75 = vector.broadcast %cst_22 : f32 to vector<2x128xf32>
    %76 = arith.addf %75, %74 : vector<2x128xf32>
    %77 = arith.divf %75, %76 : vector<2x128xf32>
    %78 = math.tanh %72 : vector<2x128xf32>
    %79 = vector.extract_strided_slice %77 {offsets = [0, 0], sizes = [2, 32], strides = [1, 1]} : vector<2x128xf32> to vector<2x32xf32>
    %80 = vector.extract_strided_slice %77 {offsets = [0, 32], sizes = [2, 32], strides = [1, 1]} : vector<2x128xf32> to vector<2x32xf32>
    %81 = vector.extract_strided_slice %78 {offsets = [0, 64], sizes = [2, 32], strides = [1, 1]} : vector<2x128xf32> to vector<2x32xf32>
    %82 = vector.extract_strided_slice %77 {offsets = [0, 96], sizes = [2, 32], strides = [1, 1]} : vector<2x128xf32> to vector<2x32xf32>
    %83 = arith.mulf %80, %45 : vector<2x32xf32>
    %84 = arith.mulf %79, %81 : vector<2x32xf32>
    %85 = arith.addf %83, %84 : vector<2x32xf32>
    %86 = math.tanh %85 : vector<2x32xf32>
    %87 = arith.mulf %82, %86 : vector<2x32xf32>
    %c2 = arith.constant 2 : index
    %c0_23 = arith.constant 0 : index
    %88 = vector.load %arg3[%c2, %c0_23] : memref<20x32xf32, #tpu.memory_space<vmem>>, vector<2x32xf32>
    tpu.vector_store %arg3[%c2, %c0_23], %87 {strides = array<i32>} : memref<20x32xf32, #tpu.memory_space<vmem>>, vector<2x32xf32>,
    %89 = vector.extract_strided_slice %27 {offsets = [16, 0], sizes = [2, 128], strides = [1, 1]} : vector<20x128xf32> to vector<2x128xf32>
    %90 = arith.truncf %67 : vector<2x32xf32> to vector<2x32xbf16>
    %cst_24 = arith.constant dense<0.000000e+00> : vector<2x128xf32>
    %91 = tpu.matmul %90, %7, %cst_24 {dimension_numbers = #tpu.dot_dimension_numbers<[1], [0], [0], [1], [0, 0, 1, 1], [], []>} : vector<2x32xbf16>, vector<32x128xbf16>, vector<2x128xf32> -> vector<2x128xf32>
    %92 = arith.addf %89, %91 : vector<2x128xf32>
    %93 = arith.negf %92 : vector<2x128xf32>
    %94 = math.exp %93 : vector<2x128xf32>
    %cst_25 = arith.constant 1.000000e+00 : f32
    %95 = vector.broadcast %cst_25 : f32 to vector<2x128xf32>
    %96 = arith.addf %95, %94 : vector<2x128xf32>
    %97 = arith.divf %95, %96 : vector<2x128xf32>
    %98 = math.tanh %92 : vector<2x128xf32>
    %99 = vector.extract_strided_slice %97 {offsets = [0, 0], sizes = [2, 32], strides = [1, 1]} : vector<2x128xf32> to vector<2x32xf32>
    %100 = vector.extract_strided_slice %97 {offsets = [0, 32], sizes = [2, 32], strides = [1, 1]} : vector<2x128xf32> to vector<2x32xf32>
    %101 = vector.extract_strided_slice %98 {offsets = [0, 64], sizes = [2, 32], strides = [1, 1]} : vector<2x128xf32> to vector<2x32xf32>
    %102 = vector.extract_strided_slice %97 {offsets = [0, 96], sizes = [2, 32], strides = [1, 1]} : vector<2x128xf32> to vector<2x32xf32>
    %103 = arith.mulf %100, %65 : vector<2x32xf32>
    %104 = arith.mulf %99, %101 : vector<2x32xf32>
    %105 = arith.addf %103, %104 : vector<2x32xf32>
    %106 = math.tanh %105 : vector<2x32xf32>
    %107 = arith.mulf %102, %106 : vector<2x32xf32>
    %c16 = arith.constant 16 : index
    %c0_26 = arith.constant 0 : index
    %108 = vector.load %arg4[%c16, %c0_26] : memref<20x32xf32, #tpu.memory_space<vmem>>, vector<2x32xf32>
    tpu.vector_store %arg4[%c16, %c0_26], %107 {strides = array<i32>} : memref<20x32xf32, #tpu.memory_space<vmem>>, vector<2x32xf32>,
    %109 = vector.extract_strided_slice %26 {offsets = [4, 0], sizes = [2, 128], strides = [1, 1]} : vector<20x128xf32> to vector<2x128xf32>
    %110 = arith.truncf %87 : vector<2x32xf32> to vector<2x32xbf16>
    %cst_27 = arith.constant dense<0.000000e+00> : vector<2x128xf32>
    %111 = tpu.matmul %110, %5, %cst_27 {dimension_numbers = #tpu.dot_dimension_numbers<[1], [0], [0], [1], [0, 0, 1, 1], [], []>} : vector<2x32xbf16>, vector<32x128xbf16>, vector<2x128xf32> -> vector<2x128xf32>
    %112 = arith.addf %109, %111 : vector<2x128xf32>
    %113 = arith.negf %112 : vector<2x128xf32>
    %114 = math.exp %113 : vector<2x128xf32>
    %cst_28 = arith.constant 1.000000e+00 : f32
    %115 = vector.broadcast %cst_28 : f32 to vector<2x128xf32>
    %116 = arith.addf %115, %114 : vector<2x128xf32>
    %117 = arith.divf %115, %116 : vector<2x128xf32>
    %118 = math.tanh %112 : vector<2x128xf32>
    %119 = vector.extract_strided_slice %117 {offsets = [0, 0], sizes = [2, 32], strides = [1, 1]} : vector<2x128xf32> to vector<2x32xf32>
    %120 = vector.extract_strided_slice %117 {offsets = [0, 32], sizes = [2, 32], strides = [1, 1]} : vector<2x128xf32> to vector<2x32xf32>
    %121 = vector.extract_strided_slice %118 {offsets = [0, 64], sizes = [2, 32], strides = [1, 1]} : vector<2x128xf32> to vector<2x32xf32>
    %122 = vector.extract_strided_slice %117 {offsets = [0, 96], sizes = [2, 32], strides = [1, 1]} : vector<2x128xf32> to vector<2x32xf32>
    %123 = arith.mulf %120, %85 : vector<2x32xf32>
    %124 = arith.mulf %119, %121 : vector<2x32xf32>
    %125 = arith.addf %123, %124 : vector<2x32xf32>
    %126 = math.tanh %125 : vector<2x32xf32>
    %127 = arith.mulf %122, %126 : vector<2x32xf32>
    %c4 = arith.constant 4 : index
    %c0_29 = arith.constant 0 : index
    %128 = vector.load %arg3[%c4, %c0_29] : memref<20x32xf32, #tpu.memory_space<vmem>>, vector<2x32xf32>
    tpu.vector_store %arg3[%c4, %c0_29], %127 {strides = array<i32>} : memref<20x32xf32, #tpu.memory_space<vmem>>, vector<2x32xf32>,
    %129 = vector.extract_strided_slice %27 {offsets = [14, 0], sizes = [2, 128], strides = [1, 1]} : vector<20x128xf32> to vector<2x128xf32>
    %130 = arith.truncf %107 : vector<2x32xf32> to vector<2x32xbf16>
    %cst_30 = arith.constant dense<0.000000e+00> : vector<2x128xf32>
    %131 = tpu.matmul %130, %7, %cst_30 {dimension_numbers = #tpu.dot_dimension_numbers<[1], [0], [0], [1], [0, 0, 1, 1], [], []>} : vector<2x32xbf16>, vector<32x128xbf16>, vector<2x128xf32> -> vector<2x128xf32>
    %132 = arith.addf %129, %131 : vector<2x128xf32>
    %133 = arith.negf %132 : vector<2x128xf32>
    %134 = math.exp %133 : vector<2x128xf32>
    %cst_31 = arith.constant 1.000000e+00 : f32
    %135 = vector.broadcast %cst_31 : f32 to vector<2x128xf32>
    %136 = arith.addf %135, %134 : vector<2x128xf32>
    %137 = arith.divf %135, %136 : vector<2x128xf32>
    %138 = math.tanh %132 : vector<2x128xf32>
    %139 = vector.extract_strided_slice %137 {offsets = [0, 0], sizes = [2, 32], strides = [1, 1]} : vector<2x128xf32> to vector<2x32xf32>
    %140 = vector.extract_strided_slice %137 {offsets = [0, 32], sizes = [2, 32], strides = [1, 1]} : vector<2x128xf32> to vector<2x32xf32>
    %141 = vector.extract_strided_slice %138 {offsets = [0, 64], sizes = [2, 32], strides = [1, 1]} : vector<2x128xf32> to vector<2x32xf32>
    %142 = vector.extract_strided_slice %137 {offsets = [0, 96], sizes = [2, 32], strides = [1, 1]} : vector<2x128xf32> to vector<2x32xf32>
    %143 = arith.mulf %140, %105 : vector<2x32xf32>
    %144 = arith.mulf %139, %141 : vector<2x32xf32>
    %145 = arith.addf %143, %144 : vector<2x32xf32>
    %146 = math.tanh %145 : vector<2x32xf32>
    %147 = arith.mulf %142, %146 : vector<2x32xf32>
    %c14 = arith.constant 14 : index
    %c0_32 = arith.constant 0 : index
    %148 = vector.load %arg4[%c14, %c0_32] : memref<20x32xf32, #tpu.memory_space<vmem>>, vector<2x32xf32>
    tpu.vector_store %arg4[%c14, %c0_32], %147 {strides = array<i32>} : memref<20x32xf32, #tpu.memory_space<vmem>>, vector<2x32xf32>,
    %149 = vector.extract_strided_slice %26 {offsets = [6, 0], sizes = [2, 128], strides = [1, 1]} : vector<20x128xf32> to vector<2x128xf32>
    %150 = arith.truncf %127 : vector<2x32xf32> to vector<2x32xbf16>
    %cst_33 = arith.constant dense<0.000000e+00> : vector<2x128xf32>
    %151 = tpu.matmul %150, %5, %cst_33 {dimension_numbers = #tpu.dot_dimension_numbers<[1], [0], [0], [1], [0, 0, 1, 1], [], []>} : vector<2x32xbf16>, vector<32x128xbf16>, vector<2x128xf32> -> vector<2x128xf32>
    %152 = arith.addf %149, %151 : vector<2x128xf32>
    %153 = arith.negf %152 : vector<2x128xf32>
    %154 = math.exp %153 : vector<2x128xf32>
    %cst_34 = arith.constant 1.000000e+00 : f32
    %155 = vector.broadcast %cst_34 : f32 to vector<2x128xf32>
    %156 = arith.addf %155, %154 : vector<2x128xf32>
    %157 = arith.divf %155, %156 : vector<2x128xf32>
    %158 = math.tanh %152 : vector<2x128xf32>
    %159 = vector.extract_strided_slice %157 {offsets = [0, 0], sizes = [2, 32], strides = [1, 1]} : vector<2x128xf32> to vector<2x32xf32>
    %160 = vector.extract_strided_slice %157 {offsets = [0, 32], sizes = [2, 32], strides = [1, 1]} : vector<2x128xf32> to vector<2x32xf32>
    %161 = vector.extract_strided_slice %158 {offsets = [0, 64], sizes = [2, 32], strides = [1, 1]} : vector<2x128xf32> to vector<2x32xf32>
    %162 = vector.extract_strided_slice %157 {offsets = [0, 96], sizes = [2, 32], strides = [1, 1]} : vector<2x128xf32> to vector<2x32xf32>
    %163 = arith.mulf %160, %125 : vector<2x32xf32>
    %164 = arith.mulf %159, %161 : vector<2x32xf32>
    %165 = arith.addf %163, %164 : vector<2x32xf32>
    %166 = math.tanh %165 : vector<2x32xf32>
    %167 = arith.mulf %162, %166 : vector<2x32xf32>
    %c6 = arith.constant 6 : index
    %c0_35 = arith.constant 0 : index
    %168 = vector.load %arg3[%c6, %c0_35] : memref<20x32xf32, #tpu.memory_space<vmem>>, vector<2x32xf32>
    tpu.vector_store %arg3[%c6, %c0_35], %167 {strides = array<i32>} : memref<20x32xf32, #tpu.memory_space<vmem>>, vector<2x32xf32>,
    %169 = vector.extract_strided_slice %27 {offsets = [12, 0], sizes = [2, 128], strides = [1, 1]} : vector<20x128xf32> to vector<2x128xf32>
    %170 = arith.truncf %147 : vector<2x32xf32> to vector<2x32xbf16>
    %cst_36 = arith.constant dense<0.000000e+00> : vector<2x128xf32>
    %171 = tpu.matmul %170, %7, %cst_36 {dimension_numbers = #tpu.dot_dimension_numbers<[1], [0], [0], [1], [0, 0, 1, 1], [], []>} : vector<2x32xbf16>, vector<32x128xbf16>, vector<2x128xf32> -> vector<2x128xf32>
    %172 = arith.addf %169, %171 : vector<2x128xf32>
    %173 = arith.negf %172 : vector<2x128xf32>
    %174 = math.exp %173 : vector<2x128xf32>
    %cst_37 = arith.constant 1.000000e+00 : f32
    %175 = vector.broadcast %cst_37 : f32 to vector<2x128xf32>
    %176 = arith.addf %175, %174 : vector<2x128xf32>
    %177 = arith.divf %175, %176 : vector<2x128xf32>
    %178 = math.tanh %172 : vector<2x128xf32>
    %179 = vector.extract_strided_slice %177 {offsets = [0, 0], sizes = [2, 32], strides = [1, 1]} : vector<2x128xf32> to vector<2x32xf32>
    %180 = vector.extract_strided_slice %177 {offsets = [0, 32], sizes = [2, 32], strides = [1, 1]} : vector<2x128xf32> to vector<2x32xf32>
    %181 = vector.extract_strided_slice %178 {offsets = [0, 64], sizes = [2, 32], strides = [1, 1]} : vector<2x128xf32> to vector<2x32xf32>
    %182 = vector.extract_strided_slice %177 {offsets = [0, 96], sizes = [2, 32], strides = [1, 1]} : vector<2x128xf32> to vector<2x32xf32>
    %183 = arith.mulf %180, %145 : vector<2x32xf32>
    %184 = arith.mulf %179, %181 : vector<2x32xf32>
    %185 = arith.addf %183, %184 : vector<2x32xf32>
    %186 = math.tanh %185 : vector<2x32xf32>
    %187 = arith.mulf %182, %186 : vector<2x32xf32>
    %c12 = arith.constant 12 : index
    %c0_38 = arith.constant 0 : index
    %188 = vector.load %arg4[%c12, %c0_38] : memref<20x32xf32, #tpu.memory_space<vmem>>, vector<2x32xf32>
    tpu.vector_store %arg4[%c12, %c0_38], %187 {strides = array<i32>} : memref<20x32xf32, #tpu.memory_space<vmem>>, vector<2x32xf32>,
    %189 = vector.extract_strided_slice %26 {offsets = [8, 0], sizes = [2, 128], strides = [1, 1]} : vector<20x128xf32> to vector<2x128xf32>
    %190 = arith.truncf %167 : vector<2x32xf32> to vector<2x32xbf16>
    %cst_39 = arith.constant dense<0.000000e+00> : vector<2x128xf32>
    %191 = tpu.matmul %190, %5, %cst_39 {dimension_numbers = #tpu.dot_dimension_numbers<[1], [0], [0], [1], [0, 0, 1, 1], [], []>} : vector<2x32xbf16>, vector<32x128xbf16>, vector<2x128xf32> -> vector<2x128xf32>
    %192 = arith.addf %189, %191 : vector<2x128xf32>
    %193 = arith.negf %192 : vector<2x128xf32>
    %194 = math.exp %193 : vector<2x128xf32>
    %cst_40 = arith.constant 1.000000e+00 : f32
    %195 = vector.broadcast %cst_40 : f32 to vector<2x128xf32>
    %196 = arith.addf %195, %194 : vector<2x128xf32>
    %197 = arith.divf %195, %196 : vector<2x128xf32>
    %198 = math.tanh %192 : vector<2x128xf32>
    %199 = vector.extract_strided_slice %197 {offsets = [0, 0], sizes = [2, 32], strides = [1, 1]} : vector<2x128xf32> to vector<2x32xf32>
    %200 = vector.extract_strided_slice %197 {offsets = [0, 32], sizes = [2, 32], strides = [1, 1]} : vector<2x128xf32> to vector<2x32xf32>
    %201 = vector.extract_strided_slice %198 {offsets = [0, 64], sizes = [2, 32], strides = [1, 1]} : vector<2x128xf32> to vector<2x32xf32>
    %202 = vector.extract_strided_slice %197 {offsets = [0, 96], sizes = [2, 32], strides = [1, 1]} : vector<2x128xf32> to vector<2x32xf32>
    %203 = arith.mulf %200, %165 : vector<2x32xf32>
    %204 = arith.mulf %199, %201 : vector<2x32xf32>
    %205 = arith.addf %203, %204 : vector<2x32xf32>
    %206 = math.tanh %205 : vector<2x32xf32>
    %207 = arith.mulf %202, %206 : vector<2x32xf32>
    %c8 = arith.constant 8 : index
    %c0_41 = arith.constant 0 : index
    %208 = vector.load %arg3[%c8, %c0_41] : memref<20x32xf32, #tpu.memory_space<vmem>>, vector<2x32xf32>
    tpu.vector_store %arg3[%c8, %c0_41], %207 {strides = array<i32>} : memref<20x32xf32, #tpu.memory_space<vmem>>, vector<2x32xf32>,
    %209 = vector.extract_strided_slice %27 {offsets = [10, 0], sizes = [2, 128], strides = [1, 1]} : vector<20x128xf32> to vector<2x128xf32>
    %210 = arith.truncf %187 : vector<2x32xf32> to vector<2x32xbf16>
    %cst_42 = arith.constant dense<0.000000e+00> : vector<2x128xf32>
    %211 = tpu.matmul %210, %7, %cst_42 {dimension_numbers = #tpu.dot_dimension_numbers<[1], [0], [0], [1], [0, 0, 1, 1], [], []>} : vector<2x32xbf16>, vector<32x128xbf16>, vector<2x128xf32> -> vector<2x128xf32>
    %212 = arith.addf %209, %211 : vector<2x128xf32>
    %213 = arith.negf %212 : vector<2x128xf32>
    %214 = math.exp %213 : vector<2x128xf32>
    %cst_43 = arith.constant 1.000000e+00 : f32
    %215 = vector.broadcast %cst_43 : f32 to vector<2x128xf32>
    %216 = arith.addf %215, %214 : vector<2x128xf32>
    %217 = arith.divf %215, %216 : vector<2x128xf32>
    %218 = math.tanh %212 : vector<2x128xf32>
    %219 = vector.extract_strided_slice %217 {offsets = [0, 0], sizes = [2, 32], strides = [1, 1]} : vector<2x128xf32> to vector<2x32xf32>
    %220 = vector.extract_strided_slice %217 {offsets = [0, 32], sizes = [2, 32], strides = [1, 1]} : vector<2x128xf32> to vector<2x32xf32>
    %221 = vector.extract_strided_slice %218 {offsets = [0, 64], sizes = [2, 32], strides = [1, 1]} : vector<2x128xf32> to vector<2x32xf32>
    %222 = vector.extract_strided_slice %217 {offsets = [0, 96], sizes = [2, 32], strides = [1, 1]} : vector<2x128xf32> to vector<2x32xf32>
    %223 = arith.mulf %220, %185 : vector<2x32xf32>
    %224 = arith.mulf %219, %221 : vector<2x32xf32>
    %225 = arith.addf %223, %224 : vector<2x32xf32>
    %226 = math.tanh %225 : vector<2x32xf32>
    %227 = arith.mulf %222, %226 : vector<2x32xf32>
    %c10 = arith.constant 10 : index
    %c0_44 = arith.constant 0 : index
    %228 = vector.load %arg4[%c10, %c0_44] : memref<20x32xf32, #tpu.memory_space<vmem>>, vector<2x32xf32>
    tpu.vector_store %arg4[%c10, %c0_44], %227 {strides = array<i32>} : memref<20x32xf32, #tpu.memory_space<vmem>>, vector<2x32xf32>,
    %229 = vector.extract_strided_slice %26 {offsets = [10, 0], sizes = [2, 128], strides = [1, 1]} : vector<20x128xf32> to vector<2x128xf32>
    %230 = arith.truncf %207 : vector<2x32xf32> to vector<2x32xbf16>
    %cst_45 = arith.constant dense<0.000000e+00> : vector<2x128xf32>
    %231 = tpu.matmul %230, %5, %cst_45 {dimension_numbers = #tpu.dot_dimension_numbers<[1], [0], [0], [1], [0, 0, 1, 1], [], []>} : vector<2x32xbf16>, vector<32x128xbf16>, vector<2x128xf32> -> vector<2x128xf32>
    %232 = arith.addf %229, %231 : vector<2x128xf32>
    %233 = arith.negf %232 : vector<2x128xf32>
    %234 = math.exp %233 : vector<2x128xf32>
    %cst_46 = arith.constant 1.000000e+00 : f32
    %235 = vector.broadcast %cst_46 : f32 to vector<2x128xf32>
    %236 = arith.addf %235, %234 : vector<2x128xf32>
    %237 = arith.divf %235, %236 : vector<2x128xf32>
    %238 = math.tanh %232 : vector<2x128xf32>
    %239 = vector.extract_strided_slice %237 {offsets = [0, 0], sizes = [2, 32], strides = [1, 1]} : vector<2x128xf32> to vector<2x32xf32>
    %240 = vector.extract_strided_slice %237 {offsets = [0, 32], sizes = [2, 32], strides = [1, 1]} : vector<2x128xf32> to vector<2x32xf32>
    %241 = vector.extract_strided_slice %238 {offsets = [0, 64], sizes = [2, 32], strides = [1, 1]} : vector<2x128xf32> to vector<2x32xf32>
    %242 = vector.extract_strided_slice %237 {offsets = [0, 96], sizes = [2, 32], strides = [1, 1]} : vector<2x128xf32> to vector<2x32xf32>
    %243 = arith.mulf %240, %205 : vector<2x32xf32>
    %244 = arith.mulf %239, %241 : vector<2x32xf32>
    %245 = arith.addf %243, %244 : vector<2x32xf32>
    %246 = math.tanh %245 : vector<2x32xf32>
    %247 = arith.mulf %242, %246 : vector<2x32xf32>
    %c10_47 = arith.constant 10 : index
    %c0_48 = arith.constant 0 : index
    %248 = vector.load %arg3[%c10_47, %c0_48] : memref<20x32xf32, #tpu.memory_space<vmem>>, vector<2x32xf32>
    tpu.vector_store %arg3[%c10_47, %c0_48], %247 {strides = array<i32>} : memref<20x32xf32, #tpu.memory_space<vmem>>, vector<2x32xf32>,
    %249 = vector.extract_strided_slice %27 {offsets = [8, 0], sizes = [2, 128], strides = [1, 1]} : vector<20x128xf32> to vector<2x128xf32>
    %250 = arith.truncf %227 : vector<2x32xf32> to vector<2x32xbf16>
    %cst_49 = arith.constant dense<0.000000e+00> : vector<2x128xf32>
    %251 = tpu.matmul %250, %7, %cst_49 {dimension_numbers = #tpu.dot_dimension_numbers<[1], [0], [0], [1], [0, 0, 1, 1], [], []>} : vector<2x32xbf16>, vector<32x128xbf16>, vector<2x128xf32> -> vector<2x128xf32>
    %252 = arith.addf %249, %251 : vector<2x128xf32>
    %253 = arith.negf %252 : vector<2x128xf32>
    %254 = math.exp %253 : vector<2x128xf32>
    %cst_50 = arith.constant 1.000000e+00 : f32
    %255 = vector.broadcast %cst_50 : f32 to vector<2x128xf32>
    %256 = arith.addf %255, %254 : vector<2x128xf32>
    %257 = arith.divf %255, %256 : vector<2x128xf32>
    %258 = math.tanh %252 : vector<2x128xf32>
    %259 = vector.extract_strided_slice %257 {offsets = [0, 0], sizes = [2, 32], strides = [1, 1]} : vector<2x128xf32> to vector<2x32xf32>
    %260 = vector.extract_strided_slice %257 {offsets = [0, 32], sizes = [2, 32], strides = [1, 1]} : vector<2x128xf32> to vector<2x32xf32>
    %261 = vector.extract_strided_slice %258 {offsets = [0, 64], sizes = [2, 32], strides = [1, 1]} : vector<2x128xf32> to vector<2x32xf32>
    %262 = vector.extract_strided_slice %257 {offsets = [0, 96], sizes = [2, 32], strides = [1, 1]} : vector<2x128xf32> to vector<2x32xf32>
    %263 = arith.mulf %260, %225 : vector<2x32xf32>
    %264 = arith.mulf %259, %261 : vector<2x32xf32>
    %265 = arith.addf %263, %264 : vector<2x32xf32>
    %266 = math.tanh %265 : vector<2x32xf32>
    %267 = arith.mulf %262, %266 : vector<2x32xf32>
    %c8_51 = arith.constant 8 : index
    %c0_52 = arith.constant 0 : index
    %268 = vector.load %arg4[%c8_51, %c0_52] : memref<20x32xf32, #tpu.memory_space<vmem>>, vector<2x32xf32>
    tpu.vector_store %arg4[%c8_51, %c0_52], %267 {strides = array<i32>} : memref<20x32xf32, #tpu.memory_space<vmem>>, vector<2x32xf32>,
    %269 = vector.extract_strided_slice %26 {offsets = [12, 0], sizes = [2, 128], strides = [1, 1]} : vector<20x128xf32> to vector<2x128xf32>
    %270 = arith.truncf %247 : vector<2x32xf32> to vector<2x32xbf16>
    %cst_53 = arith.constant dense<0.000000e+00> : vector<2x128xf32>
    %271 = tpu.matmul %270, %5, %cst_53 {dimension_numbers = #tpu.dot_dimension_numbers<[1], [0], [0], [1], [0, 0, 1, 1], [], []>} : vector<2x32xbf16>, vector<32x128xbf16>, vector<2x128xf32> -> vector<2x128xf32>
    %272 = arith.addf %269, %271 : vector<2x128xf32>
    %273 = arith.negf %272 : vector<2x128xf32>
    %274 = math.exp %273 : vector<2x128xf32>
    %cst_54 = arith.constant 1.000000e+00 : f32
    %275 = vector.broadcast %cst_54 : f32 to vector<2x128xf32>
    %276 = arith.addf %275, %274 : vector<2x128xf32>
    %277 = arith.divf %275, %276 : vector<2x128xf32>
    %278 = math.tanh %272 : vector<2x128xf32>
    %279 = vector.extract_strided_slice %277 {offsets = [0, 0], sizes = [2, 32], strides = [1, 1]} : vector<2x128xf32> to vector<2x32xf32>
    %280 = vector.extract_strided_slice %277 {offsets = [0, 32], sizes = [2, 32], strides = [1, 1]} : vector<2x128xf32> to vector<2x32xf32>
    %281 = vector.extract_strided_slice %278 {offsets = [0, 64], sizes = [2, 32], strides = [1, 1]} : vector<2x128xf32> to vector<2x32xf32>
    %282 = vector.extract_strided_slice %277 {offsets = [0, 96], sizes = [2, 32], strides = [1, 1]} : vector<2x128xf32> to vector<2x32xf32>
    %283 = arith.mulf %280, %245 : vector<2x32xf32>
    %284 = arith.mulf %279, %281 : vector<2x32xf32>
    %285 = arith.addf %283, %284 : vector<2x32xf32>
    %286 = math.tanh %285 : vector<2x32xf32>
    %287 = arith.mulf %282, %286 : vector<2x32xf32>
    %c12_55 = arith.constant 12 : index
    %c0_56 = arith.constant 0 : index
    %288 = vector.load %arg3[%c12_55, %c0_56] : memref<20x32xf32, #tpu.memory_space<vmem>>, vector<2x32xf32>
    tpu.vector_store %arg3[%c12_55, %c0_56], %287 {strides = array<i32>} : memref<20x32xf32, #tpu.memory_space<vmem>>, vector<2x32xf32>,
    %289 = vector.extract_strided_slice %27 {offsets = [6, 0], sizes = [2, 128], strides = [1, 1]} : vector<20x128xf32> to vector<2x128xf32>
    %290 = arith.truncf %267 : vector<2x32xf32> to vector<2x32xbf16>
    %cst_57 = arith.constant dense<0.000000e+00> : vector<2x128xf32>
    %291 = tpu.matmul %290, %7, %cst_57 {dimension_numbers = #tpu.dot_dimension_numbers<[1], [0], [0], [1], [0, 0, 1, 1], [], []>} : vector<2x32xbf16>, vector<32x128xbf16>, vector<2x128xf32> -> vector<2x128xf32>
    %292 = arith.addf %289, %291 : vector<2x128xf32>
    %293 = arith.negf %292 : vector<2x128xf32>
    %294 = math.exp %293 : vector<2x128xf32>
    %cst_58 = arith.constant 1.000000e+00 : f32
    %295 = vector.broadcast %cst_58 : f32 to vector<2x128xf32>
    %296 = arith.addf %295, %294 : vector<2x128xf32>
    %297 = arith.divf %295, %296 : vector<2x128xf32>
    %298 = math.tanh %292 : vector<2x128xf32>
    %299 = vector.extract_strided_slice %297 {offsets = [0, 0], sizes = [2, 32], strides = [1, 1]} : vector<2x128xf32> to vector<2x32xf32>
    %300 = vector.extract_strided_slice %297 {offsets = [0, 32], sizes = [2, 32], strides = [1, 1]} : vector<2x128xf32> to vector<2x32xf32>
    %301 = vector.extract_strided_slice %298 {offsets = [0, 64], sizes = [2, 32], strides = [1, 1]} : vector<2x128xf32> to vector<2x32xf32>
    %302 = vector.extract_strided_slice %297 {offsets = [0, 96], sizes = [2, 32], strides = [1, 1]} : vector<2x128xf32> to vector<2x32xf32>
    %303 = arith.mulf %300, %265 : vector<2x32xf32>
    %304 = arith.mulf %299, %301 : vector<2x32xf32>
    %305 = arith.addf %303, %304 : vector<2x32xf32>
    %306 = math.tanh %305 : vector<2x32xf32>
    %307 = arith.mulf %302, %306 : vector<2x32xf32>
    %c6_59 = arith.constant 6 : index
    %c0_60 = arith.constant 0 : index
    %308 = vector.load %arg4[%c6_59, %c0_60] : memref<20x32xf32, #tpu.memory_space<vmem>>, vector<2x32xf32>
    tpu.vector_store %arg4[%c6_59, %c0_60], %307 {strides = array<i32>} : memref<20x32xf32, #tpu.memory_space<vmem>>, vector<2x32xf32>,
    %309 = vector.extract_strided_slice %26 {offsets = [14, 0], sizes = [2, 128], strides = [1, 1]} : vector<20x128xf32> to vector<2x128xf32>
    %310 = arith.truncf %287 : vector<2x32xf32> to vector<2x32xbf16>
    %cst_61 = arith.constant dense<0.000000e+00> : vector<2x128xf32>
    %311 = tpu.matmul %310, %5, %cst_61 {dimension_numbers = #tpu.dot_dimension_numbers<[1], [0], [0], [1], [0, 0, 1, 1], [], []>} : vector<2x32xbf16>, vector<32x128xbf16>, vector<2x128xf32> -> vector<2x128xf32>
    %312 = arith.addf %309, %311 : vector<2x128xf32>
    %313 = arith.negf %312 : vector<2x128xf32>
    %314 = math.exp %313 : vector<2x128xf32>
    %cst_62 = arith.constant 1.000000e+00 : f32
    %315 = vector.broadcast %cst_62 : f32 to vector<2x128xf32>
    %316 = arith.addf %315, %314 : vector<2x128xf32>
    %317 = arith.divf %315, %316 : vector<2x128xf32>
    %318 = math.tanh %312 : vector<2x128xf32>
    %319 = vector.extract_strided_slice %317 {offsets = [0, 0], sizes = [2, 32], strides = [1, 1]} : vector<2x128xf32> to vector<2x32xf32>
    %320 = vector.extract_strided_slice %317 {offsets = [0, 32], sizes = [2, 32], strides = [1, 1]} : vector<2x128xf32> to vector<2x32xf32>
    %321 = vector.extract_strided_slice %318 {offsets = [0, 64], sizes = [2, 32], strides = [1, 1]} : vector<2x128xf32> to vector<2x32xf32>
    %322 = vector.extract_strided_slice %317 {offsets = [0, 96], sizes = [2, 32], strides = [1, 1]} : vector<2x128xf32> to vector<2x32xf32>
    %323 = arith.mulf %320, %285 : vector<2x32xf32>
    %324 = arith.mulf %319, %321 : vector<2x32xf32>
    %325 = arith.addf %323, %324 : vector<2x32xf32>
    %326 = math.tanh %325 : vector<2x32xf32>
    %327 = arith.mulf %322, %326 : vector<2x32xf32>
    %c14_63 = arith.constant 14 : index
    %c0_64 = arith.constant 0 : index
    %328 = vector.load %arg3[%c14_63, %c0_64] : memref<20x32xf32, #tpu.memory_space<vmem>>, vector<2x32xf32>
    tpu.vector_store %arg3[%c14_63, %c0_64], %327 {strides = array<i32>} : memref<20x32xf32, #tpu.memory_space<vmem>>, vector<2x32xf32>,
    %329 = vector.extract_strided_slice %27 {offsets = [4, 0], sizes = [2, 128], strides = [1, 1]} : vector<20x128xf32> to vector<2x128xf32>
    %330 = arith.truncf %307 : vector<2x32xf32> to vector<2x32xbf16>
    %cst_65 = arith.constant dense<0.000000e+00> : vector<2x128xf32>
    %331 = tpu.matmul %330, %7, %cst_65 {dimension_numbers = #tpu.dot_dimension_numbers<[1], [0], [0], [1], [0, 0, 1, 1], [], []>} : vector<2x32xbf16>, vector<32x128xbf16>, vector<2x128xf32> -> vector<2x128xf32>
    %332 = arith.addf %329, %331 : vector<2x128xf32>
    %333 = arith.negf %332 : vector<2x128xf32>
    %334 = math.exp %333 : vector<2x128xf32>
    %cst_66 = arith.constant 1.000000e+00 : f32
    %335 = vector.broadcast %cst_66 : f32 to vector<2x128xf32>
    %336 = arith.addf %335, %334 : vector<2x128xf32>
    %337 = arith.divf %335, %336 : vector<2x128xf32>
    %338 = math.tanh %332 : vector<2x128xf32>
    %339 = vector.extract_strided_slice %337 {offsets = [0, 0], sizes = [2, 32], strides = [1, 1]} : vector<2x128xf32> to vector<2x32xf32>
    %340 = vector.extract_strided_slice %337 {offsets = [0, 32], sizes = [2, 32], strides = [1, 1]} : vector<2x128xf32> to vector<2x32xf32>
    %341 = vector.extract_strided_slice %338 {offsets = [0, 64], sizes = [2, 32], strides = [1, 1]} : vector<2x128xf32> to vector<2x32xf32>
    %342 = vector.extract_strided_slice %337 {offsets = [0, 96], sizes = [2, 32], strides = [1, 1]} : vector<2x128xf32> to vector<2x32xf32>
    %343 = arith.mulf %340, %305 : vector<2x32xf32>
    %344 = arith.mulf %339, %341 : vector<2x32xf32>
    %345 = arith.addf %343, %344 : vector<2x32xf32>
    %346 = math.tanh %345 : vector<2x32xf32>
    %347 = arith.mulf %342, %346 : vector<2x32xf32>
    %c4_67 = arith.constant 4 : index
    %c0_68 = arith.constant 0 : index
    %348 = vector.load %arg4[%c4_67, %c0_68] : memref<20x32xf32, #tpu.memory_space<vmem>>, vector<2x32xf32>
    tpu.vector_store %arg4[%c4_67, %c0_68], %347 {strides = array<i32>} : memref<20x32xf32, #tpu.memory_space<vmem>>, vector<2x32xf32>,
    %349 = vector.extract_strided_slice %26 {offsets = [16, 0], sizes = [2, 128], strides = [1, 1]} : vector<20x128xf32> to vector<2x128xf32>
    %350 = arith.truncf %327 : vector<2x32xf32> to vector<2x32xbf16>
    %cst_69 = arith.constant dense<0.000000e+00> : vector<2x128xf32>
    %351 = tpu.matmul %350, %5, %cst_69 {dimension_numbers = #tpu.dot_dimension_numbers<[1], [0], [0], [1], [0, 0, 1, 1], [], []>} : vector<2x32xbf16>, vector<32x128xbf16>, vector<2x128xf32> -> vector<2x128xf32>
    %352 = arith.addf %349, %351 : vector<2x128xf32>
    %353 = arith.negf %352 : vector<2x128xf32>
    %354 = math.exp %353 : vector<2x128xf32>
    %cst_70 = arith.constant 1.000000e+00 : f32
    %355 = vector.broadcast %cst_70 : f32 to vector<2x128xf32>
    %356 = arith.addf %355, %354 : vector<2x128xf32>
    %357 = arith.divf %355, %356 : vector<2x128xf32>
    %358 = math.tanh %352 : vector<2x128xf32>
    %359 = vector.extract_strided_slice %357 {offsets = [0, 0], sizes = [2, 32], strides = [1, 1]} : vector<2x128xf32> to vector<2x32xf32>
    %360 = vector.extract_strided_slice %357 {offsets = [0, 32], sizes = [2, 32], strides = [1, 1]} : vector<2x128xf32> to vector<2x32xf32>
    %361 = vector.extract_strided_slice %358 {offsets = [0, 64], sizes = [2, 32], strides = [1, 1]} : vector<2x128xf32> to vector<2x32xf32>
    %362 = vector.extract_strided_slice %357 {offsets = [0, 96], sizes = [2, 32], strides = [1, 1]} : vector<2x128xf32> to vector<2x32xf32>
    %363 = arith.mulf %360, %325 : vector<2x32xf32>
    %364 = arith.mulf %359, %361 : vector<2x32xf32>
    %365 = arith.addf %363, %364 : vector<2x32xf32>
    %366 = math.tanh %365 : vector<2x32xf32>
    %367 = arith.mulf %362, %366 : vector<2x32xf32>
    %c16_71 = arith.constant 16 : index
    %c0_72 = arith.constant 0 : index
    %368 = vector.load %arg3[%c16_71, %c0_72] : memref<20x32xf32, #tpu.memory_space<vmem>>, vector<2x32xf32>
    tpu.vector_store %arg3[%c16_71, %c0_72], %367 {strides = array<i32>} : memref<20x32xf32, #tpu.memory_space<vmem>>, vector<2x32xf32>,
    %369 = vector.extract_strided_slice %27 {offsets = [2, 0], sizes = [2, 128], strides = [1, 1]} : vector<20x128xf32> to vector<2x128xf32>
    %370 = arith.truncf %347 : vector<2x32xf32> to vector<2x32xbf16>
    %cst_73 = arith.constant dense<0.000000e+00> : vector<2x128xf32>
    %371 = tpu.matmul %370, %7, %cst_73 {dimension_numbers = #tpu.dot_dimension_numbers<[1], [0], [0], [1], [0, 0, 1, 1], [], []>} : vector<2x32xbf16>, vector<32x128xbf16>, vector<2x128xf32> -> vector<2x128xf32>
    %372 = arith.addf %369, %371 : vector<2x128xf32>
    %373 = arith.negf %372 : vector<2x128xf32>
    %374 = math.exp %373 : vector<2x128xf32>
    %cst_74 = arith.constant 1.000000e+00 : f32
    %375 = vector.broadcast %cst_74 : f32 to vector<2x128xf32>
    %376 = arith.addf %375, %374 : vector<2x128xf32>
    %377 = arith.divf %375, %376 : vector<2x128xf32>
    %378 = math.tanh %372 : vector<2x128xf32>
    %379 = vector.extract_strided_slice %377 {offsets = [0, 0], sizes = [2, 32], strides = [1, 1]} : vector<2x128xf32> to vector<2x32xf32>
    %380 = vector.extract_strided_slice %377 {offsets = [0, 32], sizes = [2, 32], strides = [1, 1]} : vector<2x128xf32> to vector<2x32xf32>
    %381 = vector.extract_strided_slice %378 {offsets = [0, 64], sizes = [2, 32], strides = [1, 1]} : vector<2x128xf32> to vector<2x32xf32>
    %382 = vector.extract_strided_slice %377 {offsets = [0, 96], sizes = [2, 32], strides = [1, 1]} : vector<2x128xf32> to vector<2x32xf32>
    %383 = arith.mulf %380, %345 : vector<2x32xf32>
    %384 = arith.mulf %379, %381 : vector<2x32xf32>
    %385 = arith.addf %383, %384 : vector<2x32xf32>
    %386 = math.tanh %385 : vector<2x32xf32>
    %387 = arith.mulf %382, %386 : vector<2x32xf32>
    %c2_75 = arith.constant 2 : index
    %c0_76 = arith.constant 0 : index
    %388 = vector.load %arg4[%c2_75, %c0_76] : memref<20x32xf32, #tpu.memory_space<vmem>>, vector<2x32xf32>
    tpu.vector_store %arg4[%c2_75, %c0_76], %387 {strides = array<i32>} : memref<20x32xf32, #tpu.memory_space<vmem>>, vector<2x32xf32>,
    %389 = vector.extract_strided_slice %26 {offsets = [18, 0], sizes = [2, 128], strides = [1, 1]} : vector<20x128xf32> to vector<2x128xf32>
    %390 = arith.truncf %367 : vector<2x32xf32> to vector<2x32xbf16>
    %cst_77 = arith.constant dense<0.000000e+00> : vector<2x128xf32>
    %391 = tpu.matmul %390, %5, %cst_77 {dimension_numbers = #tpu.dot_dimension_numbers<[1], [0], [0], [1], [0, 0, 1, 1], [], []>} : vector<2x32xbf16>, vector<32x128xbf16>, vector<2x128xf32> -> vector<2x128xf32>
    %392 = arith.addf %389, %391 : vector<2x128xf32>
    %393 = arith.negf %392 : vector<2x128xf32>
    %394 = math.exp %393 : vector<2x128xf32>
    %cst_78 = arith.constant 1.000000e+00 : f32
    %395 = vector.broadcast %cst_78 : f32 to vector<2x128xf32>
    %396 = arith.addf %395, %394 : vector<2x128xf32>
    %397 = arith.divf %395, %396 : vector<2x128xf32>
    %398 = math.tanh %392 : vector<2x128xf32>
    %399 = vector.extract_strided_slice %397 {offsets = [0, 0], sizes = [2, 32], strides = [1, 1]} : vector<2x128xf32> to vector<2x32xf32>
    %400 = vector.extract_strided_slice %397 {offsets = [0, 32], sizes = [2, 32], strides = [1, 1]} : vector<2x128xf32> to vector<2x32xf32>
    %401 = vector.extract_strided_slice %398 {offsets = [0, 64], sizes = [2, 32], strides = [1, 1]} : vector<2x128xf32> to vector<2x32xf32>
    %402 = vector.extract_strided_slice %397 {offsets = [0, 96], sizes = [2, 32], strides = [1, 1]} : vector<2x128xf32> to vector<2x32xf32>
    %403 = arith.mulf %400, %365 : vector<2x32xf32>
    %404 = arith.mulf %399, %401 : vector<2x32xf32>
    %405 = arith.addf %403, %404 : vector<2x32xf32>
    %406 = math.tanh %405 : vector<2x32xf32>
    %407 = arith.mulf %402, %406 : vector<2x32xf32>
    %c18_79 = arith.constant 18 : index
    %c0_80 = arith.constant 0 : index
    %408 = vector.load %arg3[%c18_79, %c0_80] : memref<20x32xf32, #tpu.memory_space<vmem>>, vector<2x32xf32>
    tpu.vector_store %arg3[%c18_79, %c0_80], %407 {strides = array<i32>} : memref<20x32xf32, #tpu.memory_space<vmem>>, vector<2x32xf32>,
    %409 = vector.extract_strided_slice %27 {offsets = [0, 0], sizes = [2, 128], strides = [1, 1]} : vector<20x128xf32> to vector<2x128xf32>
    %410 = arith.truncf %387 : vector<2x32xf32> to vector<2x32xbf16>
    %cst_81 = arith.constant dense<0.000000e+00> : vector<2x128xf32>
    %411 = tpu.matmul %410, %7, %cst_81 {dimension_numbers = #tpu.dot_dimension_numbers<[1], [0], [0], [1], [0, 0, 1, 1], [], []>} : vector<2x32xbf16>, vector<32x128xbf16>, vector<2x128xf32> -> vector<2x128xf32>
    %412 = arith.addf %409, %411 : vector<2x128xf32>
    %413 = arith.negf %412 : vector<2x128xf32>
    %414 = math.exp %413 : vector<2x128xf32>
    %cst_82 = arith.constant 1.000000e+00 : f32
    %415 = vector.broadcast %cst_82 : f32 to vector<2x128xf32>
    %416 = arith.addf %415, %414 : vector<2x128xf32>
    %417 = arith.divf %415, %416 : vector<2x128xf32>
    %418 = math.tanh %412 : vector<2x128xf32>
    %419 = vector.extract_strided_slice %417 {offsets = [0, 0], sizes = [2, 32], strides = [1, 1]} : vector<2x128xf32> to vector<2x32xf32>
    %420 = vector.extract_strided_slice %417 {offsets = [0, 32], sizes = [2, 32], strides = [1, 1]} : vector<2x128xf32> to vector<2x32xf32>
    %421 = vector.extract_strided_slice %418 {offsets = [0, 64], sizes = [2, 32], strides = [1, 1]} : vector<2x128xf32> to vector<2x32xf32>
    %422 = vector.extract_strided_slice %417 {offsets = [0, 96], sizes = [2, 32], strides = [1, 1]} : vector<2x128xf32> to vector<2x32xf32>
    %423 = arith.mulf %420, %385 : vector<2x32xf32>
    %424 = arith.mulf %419, %421 : vector<2x32xf32>
    %425 = arith.addf %423, %424 : vector<2x32xf32>
    %426 = math.tanh %425 : vector<2x32xf32>
    %427 = arith.mulf %422, %426 : vector<2x32xf32>
    %c0_83 = arith.constant 0 : index
    %c0_84 = arith.constant 0 : index
    %428 = vector.load %arg4[%c0_83, %c0_84] : memref<20x32xf32, #tpu.memory_space<vmem>>, vector<2x32xf32>
    tpu.vector_store %arg4[%c0_83, %c0_84], %427 {strides = array<i32>} : memref<20x32xf32, #tpu.memory_space<vmem>>, vector<2x32xf32>,
    %c0_85 = arith.constant 0 : index
    %c0_86 = arith.constant 0 : index
    %429 = vector.load %arg3[%c0_85, %c0_86] : memref<20x32xf32, #tpu.memory_space<vmem>>, vector<20x32xf32>
    %430 = arith.truncf %429 : vector<20x32xf32> to vector<20x32xbf16>
    %cst_87 = arith.constant dense<0.000000e+00> : vector<20x32xf32>
    %431 = tpu.matmul %430, %9, %cst_87 {dimension_numbers = #tpu.dot_dimension_numbers<[1], [0], [0], [1], [0, 0, 1, 1], [], []>} : vector<20x32xbf16>, vector<32x32xbf16>, vector<20x32xf32> -> vector<20x32xf32>
    %c0_88 = arith.constant 0 : index
    %c0_89 = arith.constant 0 : index
    %432 = vector.load %arg4[%c0_88, %c0_89] : memref<20x32xf32, #tpu.memory_space<vmem>>, vector<20x32xf32>
    %433 = arith.truncf %432 : vector<20x32xf32> to vector<20x32xbf16>
    %cst_90 = arith.constant dense<0.000000e+00> : vector<20x32xf32>
    %434 = tpu.matmul %433, %11, %cst_90 {dimension_numbers = #tpu.dot_dimension_numbers<[1], [0], [0], [1], [0, 0, 1, 1], [], []>} : vector<20x32xbf16>, vector<32x32xbf16>, vector<20x32xf32> -> vector<20x32xf32>
    %435 = arith.addf %431, %434 : vector<20x32xf32>
    %436 = vector.broadcast %14 : vector<1x32xf32> to vector<20x32xf32>
    %437 = arith.addf %435, %436 : vector<20x32xf32>
    %c0_91 = arith.constant 0 : index
    %c0_92 = arith.constant 0 : index
    %438 = vector.load %arg2[%c0_91, %c0_92] : memref<20x32xf32, #tpu.memory_space<vmem>>, vector<20x32xf32>
    tpu.vector_store %arg2[%c0_91, %c0_92], %437 {strides = array<i32>} : memref<20x32xf32, #tpu.memory_space<vmem>>, vector<20x32xf32>,
    return
  }
}

</mosaic_0001>

<llo_original>
// kernel: _forward_padded.1
$region0: #{_forward_padded.1}
  #allocation0 [shape = 'u32[]', space=smem, size = 0x4, offset = 0x4, fixed_abs, tag = 'smem constant byte address 0x4 - core index']
  #allocation1 [shape = 'u32[144,128]{1,0:T(1,128)}', space=vmem, size = 0x12000, scoped, tag = 'internal scratch']
  #allocation2 [shape = 'f32[20,32]{1,0:T(8,128)}', space=vmem, size = 0x3000, scoped, tag = 'scratch operand']
  #allocation3 [shape = 'f32[20,32]{1,0:T(8,128)}', space=vmem, size = 0x3000, scoped, tag = 'scratch operand']
  %s0 = inlined_call_operand.vmem [shape: f32[20,32], index: 0, kind: input, shape index: {}]
  %s1 = inlined_call_operand.vmem [shape: f32[195,256], index: 1, kind: input, shape index: {}]
  %s2 = inlined_call_operand.vmem [shape: f32[20,32], index: 2, kind: output, shape index: {}]
  %s3 = sld [smem:[#allocation0]]
  $region18: #{_forward_padded.1} parent=0
    _
  %s5 = ssub.s32 1, %s3
  %s6 = scalar_select 0, %s5, %s3
  // Predicated region
  $region2: #{_forward_padded.1} parent=0 // pred_check
    _
  $region3: #{_forward_padded.1} parent=0 // pred_check_branch
    %8 = sbr.rel (0) target = $region5
  $region4: #{_forward_padded.1} parent=0 // pred_region
    _
  $region5: #{_forward_padded.1} parent=0 // pred_fallthru
    _
  // Predicated region
  $region6: #{_forward_padded.1} parent=0 // pred_check
    _
  $region7: #{_forward_padded.1} parent=0 // pred_check_branch
    %10 = sbr.rel (0) target = $region9
  $region8: #{_forward_padded.1} parent=0 // pred_region
    _
  $region9: #{_forward_padded.1} parent=0 // pred_fallthru
    _
  %v12 = vld [vmem:[%s1] sm:$0xff]
  %v13 = vld [vmem:[%s1 + $0x10] sm:$0xff]
  %v14 = vld [vmem:[%s1 + $0x20] sm:$0xff]
  %v15 = vld [vmem:[%s1 + $0x30] sm:$0xff]
  %v16 = vpack.c.bf16 %v13, %v12
  %v17 = vpack.c.bf16 %v15, %v14
  %v18 = vld [vmem:[%s1 + $0x40] sm:$0xff]
  %v19 = vld [vmem:[%s1 + $0x48] sm:$0xff]
  %v20 = vld [vmem:[%s1 + $0x50] sm:$0xff]
  %v21 = vld [vmem:[%s1 + $0x58] sm:$0xff]
  %v22 = vld [vmem:[%s1 + $0x60] sm:$0xff]
  %v23 = vld [vmem:[%s1 + $0x68] sm:$0xff]
  %v24 = vld [vmem:[%s1 + $0x70] sm:$0xff]
  %v25 = vld [vmem:[%s1 + $0x78] sm:$0xff]
  %v26 = vpack.c.bf16 %v20, %v18
  %v27 = vpack.c.bf16 %v21, %v19
  %v28 = vpack.c.bf16 %v24, %v22
  %v29 = vpack.c.bf16 %v25, %v23
  %v30 = vld [vmem:[%s1 + $0x80] sm:$0xff]
  %v31 = vld [vmem:[%s1 + $0x90] sm:$0xff]
  %v32 = vld [vmem:[%s1 + $0xa0] sm:$0xff]
  %v33 = vld [vmem:[%s1 + $0xb0] sm:$0xff]
  %v34 = vpack.c.bf16 %v31, %v30
  %v35 = vpack.c.bf16 %v33, %v32
  %v36 = vld [vmem:[%s1 + $0xc0] sm:$0xff]
  %v37 = vld [vmem:[%s1 + $0xd0] sm:$0xff]
  %v38 = vld [vmem:[%s1 + $0xe0] sm:$0xff]
  %v39 = vld [vmem:[%s1 + $0xf0] sm:$0xff]
  %v40 = vpack.c.bf16 %v37, %v36
  %v41 = vpack.c.bf16 %v39, %v38
  %v42 = vld [vmem:[%s1 + $0x100] sm:$0xff]
  %v43 = vld [vmem:[%s1 + $0x110] sm:$0xff]
  %v44 = vld [vmem:[%s1 + $0x120] sm:$0xff]
  %v45 = vld [vmem:[%s1 + $0x130] sm:$0xff]
  %v46 = vpack.c.bf16 %v43, %v42
  %v47 = vpack.c.bf16 %v45, %v44
  %v48 = vld [vmem:[%s1 + $0x140] sm:$0xff]
  %v49 = vld [vmem:[%s1 + $0x150] sm:$0xff]
  %v50 = vld [vmem:[%s1 + $0x160] sm:$0xff]
  %v51 = vld [vmem:[%s1 + $0x170] sm:$0xff]
  %v52 = vpack.c.bf16 %v49, %v48
  %v53 = vpack.c.bf16 %v51, %v50
  %v54 = vld [vmem:[%s1 + $0x180] ss:$0 sm:$0xff]
  %s55 = scalar_lea.vmem %s1, 385
  %v56 = vld [vmem:[%s55] ss:$8 sm:$0x3]
  %v57 = vld [vmem:[%s1 + $0x182] ss:$0 sm:$0xff]
  %v58 = vld [vmem:[%s0] sm:$0xff]
  %v59 = vld [vmem:[%s0 + $0x8] sm:$0xff]
  %v60 = vld [vmem:[%s0 + $0x10] sm:$0xf]
  %v61 = vpack.c.bf16 %v59, %v58
  %v62 = vpack.c.bf16 %v60, %v60
  %vm63 = vcmask 261120
  %v65 = vsel %vm63, %v61, 0
  %v68 = vsel %vm63, %v62, 0
  %70 = vmatprep.subr.bf16.mxu0 0
  %71 = vmatpush1.bf16.msra.mxu0 %v16
  %72 = vmatprep.subr.bf16.mxu0 0
  %73 = vmatpush1.bf16.msra.mxu0 %v17
  %74 = vmatprep.subr.bf16.mxu0 0
  %75 = vmatpush1.bf16.msra.mxu0 0
  %76 = vmatprep.subr.bf16.mxu0 0
  %77 = vmatpush1.bf16.msra.mxu0 0
  %78 = vmatprep.subr.bf16.mxu0 0
  %79 = vmatpush1.bf16.msra.mxu0 0
  %80 = vmatprep.subr.bf16.mxu0 0
  %81 = vmatpush1.bf16.msra.mxu0 0
  %82 = vmatprep.subr.bf16.mxu0 0
  %83 = vmatpush1.bf16.msra.mxu0 0
  %84 = vmatprep.subr.bf16.mxu0 0
  %85 = vmatpush1.bf16.msra.mxu0 0
  %86 = vmatprep.subr.bf16.mxu0 0
  %87 = vmatpush1.bf16.msra.mxu0 0
  %88 = vmatprep.subr.bf16.mxu0 0
  %89 = vmatpush1.bf16.msra.mxu0 0
  %90 = vmatprep.subr.bf16.mxu0 0
  %91 = vmatpush1.bf16.msra.mxu0 0
  %92 = vmatprep.subr.bf16.mxu0 0
  %93 = vmatpush1.bf16.msra.mxu0 0
  %94 = vmatprep.subr.bf16.mxu0 0
  %95 = vmatpush1.bf16.msra.mxu0 0
  %96 = vmatprep.subr.bf16.mxu0 0
  %97 = vmatpush1.bf16.msra.mxu0 0
  %98 = vmatprep.subr.bf16.mxu0 0
  %99 = vmatpush1.bf16.msra.mxu0 0
  %100 = vmatprep.subr.bf16.mxu0 0
  %101 = vmatpush1.bf16.msra.mxu0 0
  %102 = vmatprep.mubr.bf16.mxu0 0
  %103 = vmatmul.mubr.bf16.gmra.mrb[0].mxu0 %v65
  %v104 = vpop.f32.mrb[0].mxu0
  %v105 = vadd.f32 %v54, %v104
  %v106 = vpop.f32.mrb[0].mxu0
  %v107 = vpop.f32.mrb[0].mxu0
  %v108 = vadd.f32 %v54, %v107
  %v109 = vpop.f32.mrb[0].mxu0
  %110 = vmatprep.mubr.bf16.mxu0 0
  %111 = vmatmul.mubr.bf16.gmra.mrb[0].mxu0 %v68
  %v112 = vpop.f32.mrb[0].mxu0
  %v113 = vadd.f32 %v54, %v112
  %v114 = vpop.f32.mrb[0].mxu0
  %v115 = vpop.f32.mrb[0].mxu0
  %v116 = vpop.f32.mrb[0].mxu0
  %117 = vdwg.mxu0
  %v118 = vmax.f32 %v105, 0.0
  %v119 = vmax.f32 %v108, 0.0
  %v120 = vmax.f32 %v113, 0.0
  %v121 = vpack.c.bf16 %v119, %v118
  %v122 = vpack.c.bf16 %v120, %v120
  %v124 = vlaneseq
  %v125 = vshrl.u32 %v124, 7
  %v126 = vsub.s32 0, %v125
  %v127 = vrot.slane %v56, %v126
  %v128 = vlaneseq
  %v129 = vshrl.u32 %v128, 7
  %v130 = vsub.s32 1, %v129
  %v131 = vrot.slane %v56, %v130
  %v135 = vsel %vm63, %v121, 0
  %v138 = vsel %vm63, %v122, 0
  %140 = vmatprep.subr.bf16.mxu0 %v27
  %141 = vmatpush1.bf16.msra.mxu0 %v26
  %142 = vmatprep.subr.bf16.mxu0 %v29
  %143 = vmatpush1.bf16.msra.mxu0 %v28
  %144 = vmatprep.subr.bf16.mxu0 0
  %145 = vmatpush1.bf16.msra.mxu0 0
  %146 = vmatprep.subr.bf16.mxu0 0
  %147 = vmatpush1.bf16.msra.mxu0 0
  %148 = vmatprep.subr.bf16.mxu0 0
  %149 = vmatpush1.bf16.msra.mxu0 0
  %150 = vmatprep.subr.bf16.mxu0 0
  %151 = vmatpush1.bf16.msra.mxu0 0
  %152 = vmatprep.subr.bf16.mxu0 0
  %153 = vmatpush1.bf16.msra.mxu0 0
  %154 = vmatprep.subr.bf16.mxu0 0
  %155 = vmatpush1.bf16.msra.mxu0 0
  %156 = vmatprep.subr.bf16.mxu0 0
  %157 = vmatpush1.bf16.msra.mxu0 0
  %158 = vmatprep.subr.bf16.mxu0 0
  %159 = vmatpush1.bf16.msra.mxu0 0
  %160 = vmatprep.subr.bf16.mxu0 0
  %161 = vmatpush1.bf16.msra.mxu0 0
  %162 = vmatprep.subr.bf16.mxu0 0
  %163 = vmatpush1.bf16.msra.mxu0 0
  %164 = vmatprep.subr.bf16.mxu0 0
  %165 = vmatpush1.bf16.msra.mxu0 0
  %166 = vmatprep.subr.bf16.mxu0 0
  %167 = vmatpush1.bf16.msra.mxu0 0
  %168 = vmatprep.subr.bf16.mxu0 0
  %169 = vmatpush1.bf16.msra.mxu0 0
  %170 = vmatprep.subr.bf16.mxu0 0
  %171 = vmatpush1.bf16.msra.mxu0 0
  %172 = vmatprep.mubr.bf16.mxu0 0
  %173 = vmatmul.mubr.bf16.gmra.mrb[0].mxu0 %v135
  %v174 = vpop.f32.mrb[0].mxu0
  %v175 = vadd.f32 %v127, %v174
  %v176 = vpop.f32.mrb[0].mxu0
  %v177 = vadd.f32 %v131, %v176
  %v178 = vpop.f32.mrb[0].mxu0
  %v179 = vadd.f32 %v127, %v178
  %v180 = vpop.f32.mrb[0].mxu0
  %v181 = vadd.f32 %v131, %v180
  %182 = vmatprep.mubr.bf16.mxu0 0
  %183 = vmatmul.mubr.bf16.gmra.mrb[0].mxu0 %v138
  %v184 = vpop.f32.mrb[0].mxu0
  %v185 = vadd.f32 %v127, %v184
  %v186 = vpop.f32.mrb[0].mxu0
  %v187 = vadd.f32 %v131, %v186
  %v188 = vpop.f32.mrb[0].mxu0
  %v189 = vpop.f32.mrb[0].mxu0
  %190 = vdwg.mxu0
  %v192 = vsel %vm63, 0, 0
  %194 = vmatprep.subr.bf16.mxu0 0
  %195 = vmatpush1.bf16.msra.mxu0 %v34
  %196 = vmatprep.subr.bf16.mxu0 0
  %197 = vmatpush1.bf16.msra.mxu0 %v35
  %198 = vmatprep.subr.bf16.mxu0 0
  %199 = vmatpush1.bf16.msra.mxu0 0
  %200 = vmatprep.subr.bf16.mxu0 0
  %201 = vmatpush1.bf16.msra.mxu0 0
  %202 = vmatprep.subr.bf16.mxu0 0
  %203 = vmatpush1.bf16.msra.mxu0 0
  %204 = vmatprep.subr.bf16.mxu0 0
  %205 = vmatpush1.bf16.msra.mxu0 0
  %206 = vmatprep.subr.bf16.mxu0 0
  %207 = vmatpush1.bf16.msra.mxu0 0
  %208 = vmatprep.subr.bf16.mxu0 0
  %209 = vmatpush1.bf16.msra.mxu0 0
  %210 = vmatprep.subr.bf16.mxu0 0
  %211 = vmatpush1.bf16.msra.mxu0 0
  %212 = vmatprep.subr.bf16.mxu0 0
  %213 = vmatpush1.bf16.msra.mxu0 0
  %214 = vmatprep.subr.bf16.mxu0 0
  %215 = vmatpush1.bf16.msra.mxu0 0
  %216 = vmatprep.subr.bf16.mxu0 0
  %217 = vmatpush1.bf16.msra.mxu0 0
  %218 = vmatprep.subr.bf16.mxu0 0
  %219 = vmatpush1.bf16.msra.mxu0 0
  %220 = vmatprep.subr.bf16.mxu0 0
  %221 = vmatpush1.bf16.msra.mxu0 0
  %222 = vmatprep.subr.bf16.mxu0 0
  %223 = vmatpush1.bf16.msra.mxu0 0
  %224 = vmatprep.subr.bf16.mxu0 0
  %225 = vmatpush1.bf16.msra.mxu0 0
  %226 = vmatprep.mubr.bf16.mxu0 0
  %227 = vmatmul.mubr.bf16.gmra.mrb[0].mxu0 %v192
  %v228 = vpop.f32.mrb[0].mxu0
  %v229 = vadd.f32 0.0, %v228
  %v230 = vpop.f32.mrb[0].mxu0
  %v231 = vpop.f32.mrb[0].mxu0
  %v232 = vpop.f32.mrb[0].mxu0
  %233 = vdwg.mxu0
  %v234 = vadd.f32 %v175, %v229
  %v235 = vxor.u32 %v234, 2147483648
  %v236 = vmul.f32 %v235, 1.442695
  %v237 = vpow.pop %v236
  %v238 = vadd.f32 %v237, 1.0
  %v239 = vrcp.pop %v238
  %v240 = vmul.f32 1.0, %v239
  %v241 = vtanh.pop %v234
  %v242 = vmul.f32 %v240, 0.0
  %244 = vrot.lane.b32.xlu0 %v241, 64
  %v245 = vpop.permute.xlu0 %244
  %v247 = vmul.f32 %v240, %v245
  %249 = vrot.lane.b32.xlu0 %v247, 32
  %v250 = vpop.permute.xlu0 %249
  %v252 = vadd.f32 %v242, %v250
  %v253 = vtanh.pop %v252
  %255 = vrot.lane.b32.xlu0 %v253, 64
  %v256 = vpop.permute.xlu0 %255
  %v258 = vmul.f32 %v240, %v256
  %260 = vrot.lane.b32.xlu0 %v258, 32
  %v261 = vpop.permute.xlu0 %260
  %vm263 = vcmask 254976
  %264 = vst.msk [vmem:[#allocation2] sm:$0x3] %vm263, %v261
  %265 = vmatprep.subr.bf16.mxu0 0
  %266 = vmatpush1.bf16.msra.mxu0 %v40
  %267 = vmatprep.subr.bf16.mxu0 0
  %268 = vmatpush1.bf16.msra.mxu0 %v41
  %269 = vmatprep.subr.bf16.mxu0 0
  %270 = vmatpush1.bf16.msra.mxu0 0
  %271 = vmatprep.subr.bf16.mxu0 0
  %272 = vmatpush1.bf16.msra.mxu0 0
  %273 = vmatprep.subr.bf16.mxu0 0
  %274 = vmatpush1.bf16.msra.mxu0 0
  %275 = vmatprep.subr.bf16.mxu0 0
  %276 = vmatpush1.bf16.msra.mxu0 0
  %277 = vmatprep.subr.bf16.mxu0 0
  %278 = vmatpush1.bf16.msra.mxu0 0
  %279 = vmatprep.subr.bf16.mxu0 0
  %280 = vmatpush1.bf16.msra.mxu0 0
  %281 = vmatprep.subr.bf16.mxu0 0
  %282 = vmatpush1.bf16.msra.mxu0 0
  %283 = vmatprep.subr.bf16.mxu0 0
  %284 = vmatpush1.bf16.msra.mxu0 0
  %285 = vmatprep.subr.bf16.mxu0 0
  %286 = vmatpush1.bf16.msra.mxu0 0
  %287 = vmatprep.subr.bf16.mxu0 0
  %288 = vmatpush1.bf16.msra.mxu0 0
  %289 = vmatprep.subr.bf16.mxu0 0
  %290 = vmatpush1.bf16.msra.mxu0 0
  %291 = vmatprep.subr.bf16.mxu0 0
  %292 = vmatpush1.bf16.msra.mxu0 0
  %293 = vmatprep.subr.bf16.mxu0 0
  %294 = vmatpush1.bf16.msra.mxu0 0
  %295 = vmatprep.subr.bf16.mxu0 0
  %296 = vmatpush1.bf16.msra.mxu0 0
  %297 = vmatprep.mubr.bf16.mxu0 0
  %298 = vmatmul.mubr.bf16.gmra.mrb[0].mxu0 %v192
  %v299 = vpop.f32.mrb[0].mxu0
  %v300 = vadd.f32 0.0, %v299
  %v301 = vpop.f32.mrb[0].mxu0
  %v302 = vpop.f32.mrb[0].mxu0
  %v303 = vpop.f32.mrb[0].mxu0
  %304 = vdwg.mxu0
  %v306 = vrot.slane %v300, 6
  %v308 = vadd.f32 %v187, %v306
  %v309 = vxor.u32 %v308, 2147483648
  %v310 = vmul.f32 %v309, 1.442695
  %v311 = vpow.pop %v310
  %v312 = vadd.f32 %v311, 1.0
  %v313 = vrcp.pop %v312
  %v314 = vmul.f32 1.0, %v313
  %v315 = vtanh.pop %v308
  %v316 = vmul.f32 %v314, 0.0
  %318 = vrot.lane.b32.xlu0 %v315, 64
  %v319 = vpop.permute.xlu0 %318
  %v321 = vmul.f32 %v314, %v319
  %323 = vrot.lane.b32.xlu0 %v321, 32
  %v324 = vpop.permute.xlu0 %323
  %v326 = vadd.f32 %v316, %v324
  %v327 = vtanh.pop %v326
  %329 = vrot.lane.b32.xlu0 %v327, 64
  %v330 = vpop.permute.xlu0 %329
  %v332 = vmul.f32 %v314, %v330
  %334 = vrot.lane.b32.xlu0 %v332, 32
  %v335 = vpop.permute.xlu0 %334
  %vm337 = vcmask 257026
  %338 = vst.msk [vmem:[#allocation3 + $0x10] sm:$0xc] %vm337, %v335
  %v339 = vpack.c.bf16 %v258, %v258
  %341 = vrot.lane.b32.xlu0 %v339, 32
  %v342 = vpop.permute.xlu0 %341
  %v344 = vsel %vm63, %v342, 0
  %346 = vmatprep.subr.bf16.mxu0 0
  %347 = vmatpush1.bf16.msra.mxu0 %v34
  %348 = vmatprep.subr.bf16.mxu0 0
  %349 = vmatpush1.bf16.msra.mxu0 %v35
  %350 = vmatprep.subr.bf16.mxu0 0
  %351 = vmatpush1.bf16.msra.mxu0 0
  %352 = vmatprep.subr.bf16.mxu0 0
  %353 = vmatpush1.bf16.msra.mxu0 0
  %354 = vmatprep.subr.bf16.mxu0 0
  %355 = vmatpush1.bf16.msra.mxu0 0
  %356 = vmatprep.subr.bf16.mxu0 0
  %357 = vmatpush1.bf16.msra.mxu0 0
  %358 = vmatprep.subr.bf16.mxu0 0
  %359 = vmatpush1.bf16.msra.mxu0 0
  %360 = vmatprep.subr.bf16.mxu0 0
  %361 = vmatpush1.bf16.msra.mxu0 0
  %362 = vmatprep.subr.bf16.mxu0 0
  %363 = vmatpush1.bf16.msra.mxu0 0
  %364 = vmatprep.subr.bf16.mxu0 0
  %365 = vmatpush1.bf16.msra.mxu0 0
  %366 = vmatprep.subr.bf16.mxu0 0
  %367 = vmatpush1.bf16.msra.mxu0 0
  %368 = vmatprep.subr.bf16.mxu0 0
  %369 = vmatpush1.bf16.msra.mxu0 0
  %370 = vmatprep.subr.bf16.mxu0 0
  %371 = vmatpush1.bf16.msra.mxu0 0
  %372 = vmatprep.subr.bf16.mxu0 0
  %373 = vmatpush1.bf16.msra.mxu0 0
  %374 = vmatprep.subr.bf16.mxu0 0
  %375 = vmatpush1.bf16.msra.mxu0 0
  %376 = vmatprep.subr.bf16.mxu0 0
  %377 = vmatpush1.bf16.msra.mxu0 0
  %378 = vmatprep.mubr.bf16.mxu0 0
  %379 = vmatmul.mubr.bf16.gmra.mrb[0].mxu0 %v344
  %v380 = vpop.f32.mrb[0].mxu0
  %v381 = vadd.f32 0.0, %v380
  %v382 = vpop.f32.mrb[0].mxu0
  %v383 = vpop.f32.mrb[0].mxu0
  %v384 = vpop.f32.mrb[0].mxu0
  %385 = vdwg.mxu0
  %v387 = vrot.slane %v381, 6
  %v389 = vadd.f32 %v175, %v387
  %v390 = vxor.u32 %v389, 2147483648
  %v391 = vmul.f32 %v390, 1.442695
  %v392 = vpow.pop %v391
  %v393 = vadd.f32 %v392, 1.0
  %v394 = vrcp.pop %v393
  %v395 = vmul.f32 1.0, %v394
  %v396 = vtanh.pop %v389
  %v398 = vrot.slane %v252, 6
  %v400 = vmul.f32 %v395, %v398
  %402 = vrot.lane.b32.xlu0 %v396, 64
  %v403 = vpop.permute.xlu0 %402
  %v405 = vmul.f32 %v395, %v403
  %407 = vrot.lane.b32.xlu0 %v405, 32
  %v408 = vpop.permute.xlu0 %407
  %v410 = vadd.f32 %v400, %v408
  %v411 = vtanh.pop %v410
  %413 = vrot.lane.b32.xlu0 %v411, 64
  %v414 = vpop.permute.xlu0 %413
  %v416 = vmul.f32 %v395, %v414
  %418 = vrot.lane.b32.xlu0 %v416, 32
  %v419 = vpop.permute.xlu0 %418
  %421 = vst.msk [vmem:[#allocation2] sm:$0xc] %vm337, %v419
  %v422 = vpack.c.bf16 %v332, %v332
  %v424 = vrot.slane %v422, 1
  %425 = vrot.lane.b32.xlu0 %v424, 32
  %v426 = vpop.permute.xlu0 %425
  %v428 = vsel %vm63, %v426, 0
  %430 = vmatprep.subr.bf16.mxu0 0
  %431 = vmatpush1.bf16.msra.mxu0 %v40
  %432 = vmatprep.subr.bf16.mxu0 0
  %433 = vmatpush1.bf16.msra.mxu0 %v41
  %434 = vmatprep.subr.bf16.mxu0 0
  %435 = vmatpush1.bf16.msra.mxu0 0
  %436 = vmatprep.subr.bf16.mxu0 0
  %437 = vmatpush1.bf16.msra.mxu0 0
  %438 = vmatprep.subr.bf16.mxu0 0
  %439 = vmatpush1.bf16.msra.mxu0 0
  %440 = vmatprep.subr.bf16.mxu0 0
  %441 = vmatpush1.bf16.msra.mxu0 0
  %442 = vmatprep.subr.bf16.mxu0 0
  %443 = vmatpush1.bf16.msra.mxu0 0
  %444 = vmatprep.subr.bf16.mxu0 0
  %445 = vmatpush1.bf16.msra.mxu0 0
  %446 = vmatprep.subr.bf16.mxu0 0
  %447 = vmatpush1.bf16.msra.mxu0 0
  %448 = vmatprep.subr.bf16.mxu0 0
  %449 = vmatpush1.bf16.msra.mxu0 0
  %450 = vmatprep.subr.bf16.mxu0 0
  %451 = vmatpush1.bf16.msra.mxu0 0
  %452 = vmatprep.subr.bf16.mxu0 0
  %453 = vmatpush1.bf16.msra.mxu0 0
  %454 = vmatprep.subr.bf16.mxu0 0
  %455 = vmatpush1.bf16.msra.mxu0 0
  %456 = vmatprep.subr.bf16.mxu0 0
  %457 = vmatpush1.bf16.msra.mxu0 0
  %458 = vmatprep.subr.bf16.mxu0 0
  %459 = vmatpush1.bf16.msra.mxu0 0
  %460 = vmatprep.subr.bf16.mxu0 0
  %461 = vmatpush1.bf16.msra.mxu0 0
  %462 = vmatprep.mubr.bf16.mxu0 0
  %463 = vmatmul.mubr.bf16.gmra.mrb[0].mxu0 %v428
  %v464 = vpop.f32.mrb[0].mxu0
  %v465 = vadd.f32 0.0, %v464
  %v466 = vpop.f32.mrb[0].mxu0
  %v467 = vpop.f32.mrb[0].mxu0
  %v468 = vpop.f32.mrb[0].mxu0
  %469 = vdwg.mxu0
  %v470 = vadd.f32 %v187, %v465
  %v471 = vxor.u32 %v470, 2147483648
  %v472 = vmul.f32 %v471, 1.442695
  %v473 = vpow.pop %v472
  %v474 = vadd.f32 %v473, 1.0
  %v475 = vrcp.pop %v474
  %v476 = vmul.f32 1.0, %v475
  %v477 = vtanh.pop %v470
  %v479 = vrot.slane %v326, 2
  %v481 = vmul.f32 %v476, %v479
  %483 = vrot.lane.b32.xlu0 %v477, 64
  %v484 = vpop.permute.xlu0 %483
  %v486 = vmul.f32 %v476, %v484
  %488 = vrot.lane.b32.xlu0 %v486, 32
  %v489 = vpop.permute.xlu0 %488
  %v491 = vadd.f32 %v481, %v489
  %v492 = vtanh.pop %v491
  %494 = vrot.lane.b32.xlu0 %v492, 64
  %v495 = vpop.permute.xlu0 %494
  %v497 = vmul.f32 %v476, %v495
  %499 = vrot.lane.b32.xlu0 %v497, 32
  %v500 = vpop.permute.xlu0 %499
  %502 = vst.msk [vmem:[#allocation3 + $0x10] sm:$0x3] %vm263, %v500
  %v503 = vpack.c.bf16 %v416, %v416
  %v505 = vrot.slane %v503, 1
  %506 = vrot.lane.b32.xlu0 %v505, 32
  %v507 = vpop.permute.xlu0 %506
  %v509 = vsel %vm63, %v507, 0
  %511 = vmatprep.subr.bf16.mxu0 0
  %512 = vmatpush1.bf16.msra.mxu0 %v34
  %513 = vmatprep.subr.bf16.mxu0 0
  %514 = vmatpush1.bf16.msra.mxu0 %v35
  %515 = vmatprep.subr.bf16.mxu0 0
  %516 = vmatpush1.bf16.msra.mxu0 0
  %517 = vmatprep.subr.bf16.mxu0 0
  %518 = vmatpush1.bf16.msra.mxu0 0
  %519 = vmatprep.subr.bf16.mxu0 0
  %520 = vmatpush1.bf16.msra.mxu0 0
  %521 = vmatprep.subr.bf16.mxu0 0
  %522 = vmatpush1.bf16.msra.mxu0 0
  %523 = vmatprep.subr.bf16.mxu0 0
  %524 = vmatpush1.bf16.msra.mxu0 0
  %525 = vmatprep.subr.bf16.mxu0 0
  %526 = vmatpush1.bf16.msra.mxu0 0
  %527 = vmatprep.subr.bf16.mxu0 0
  %528 = vmatpush1.bf16.msra.mxu0 0
  %529 = vmatprep.subr.bf16.mxu0 0
  %530 = vmatpush1.bf16.msra.mxu0 0
  %531 = vmatprep.subr.bf16.mxu0 0
  %532 = vmatpush1.bf16.msra.mxu0 0
  %533 = vmatprep.subr.bf16.mxu0 0
  %534 = vmatpush1.bf16.msra.mxu0 0
  %535 = vmatprep.subr.bf16.mxu0 0
  %536 = vmatpush1.bf16.msra.mxu0 0
  %537 = vmatprep.subr.bf16.mxu0 0
  %538 = vmatpush1.bf16.msra.mxu0 0
  %539 = vmatprep.subr.bf16.mxu0 0
  %540 = vmatpush1.bf16.msra.mxu0 0
  %541 = vmatprep.subr.bf16.mxu0 0
  %542 = vmatpush1.bf16.msra.mxu0 0
  %543 = vmatprep.mubr.bf16.mxu0 0
  %544 = vmatmul.mubr.bf16.gmra.mrb[0].mxu0 %v509
  %v545 = vpop.f32.mrb[0].mxu0
  %v546 = vadd.f32 0.0, %v545
  %v547 = vpop.f32.mrb[0].mxu0
  %v548 = vpop.f32.mrb[0].mxu0
  %v549 = vpop.f32.mrb[0].mxu0
  %550 = vdwg.mxu0
  %v552 = vrot.slane %v546, 4
  %v554 = vadd.f32 %v175, %v552
  %v555 = vxor.u32 %v554, 2147483648
  %v556 = vmul.f32 %v555, 1.442695
  %v557 = vpow.pop %v556
  %v558 = vadd.f32 %v557, 1.0
  %v559 = vrcp.pop %v558
  %v560 = vmul.f32 1.0, %v559
  %v561 = vtanh.pop %v554
  %v563 = vrot.slane %v410, 6
  %v565 = vmul.f32 %v560, %v563
  %567 = vrot.lane.b32.xlu0 %v561, 64
  %v568 = vpop.permute.xlu0 %567
  %v570 = vmul.f32 %v560, %v568
  %572 = vrot.lane.b32.xlu0 %v570, 32
  %v573 = vpop.permute.xlu0 %572
  %v575 = vadd.f32 %v565, %v573
  %v576 = vtanh.pop %v575
  %578 = vrot.lane.b32.xlu0 %v576, 64
  %v579 = vpop.permute.xlu0 %578
  %v581 = vmul.f32 %v560, %v579
  %583 = vrot.lane.b32.xlu0 %v581, 32
  %v584 = vpop.permute.xlu0 %583
  %vm586 = vcmask 259076
  %587 = vst.msk [vmem:[#allocation2] sm:$0x30] %vm586, %v584
  %v588 = vpack.c.bf16 %v497, %v497
  %590 = vrot.lane.b32.xlu0 %v588, 32
  %v591 = vpop.permute.xlu0 %590
  %v593 = vsel %vm63, %v591, 0
  %595 = vmatprep.subr.bf16.mxu0 0
  %596 = vmatpush1.bf16.msra.mxu0 %v40
  %597 = vmatprep.subr.bf16.mxu0 0
  %598 = vmatpush1.bf16.msra.mxu0 %v41
  %599 = vmatprep.subr.bf16.mxu0 0
  %600 = vmatpush1.bf16.msra.mxu0 0
  %601 = vmatprep.subr.bf16.mxu0 0
  %602 = vmatpush1.bf16.msra.mxu0 0
  %603 = vmatprep.subr.bf16.mxu0 0
  %604 = vmatpush1.bf16.msra.mxu0 0
  %605 = vmatprep.subr.bf16.mxu0 0
  %606 = vmatpush1.bf16.msra.mxu0 0
  %607 = vmatprep.subr.bf16.mxu0 0
  %608 = vmatpush1.bf16.msra.mxu0 0
  %609 = vmatprep.subr.bf16.mxu0 0
  %610 = vmatpush1.bf16.msra.mxu0 0
  %611 = vmatprep.subr.bf16.mxu0 0
  %612 = vmatpush1.bf16.msra.mxu0 0
  %613 = vmatprep.subr.bf16.mxu0 0
  %614 = vmatpush1.bf16.msra.mxu0 0
  %615 = vmatprep.subr.bf16.mxu0 0
  %616 = vmatpush1.bf16.msra.mxu0 0
  %617 = vmatprep.subr.bf16.mxu0 0
  %618 = vmatpush1.bf16.msra.mxu0 0
  %619 = vmatprep.subr.bf16.mxu0 0
  %620 = vmatpush1.bf16.msra.mxu0 0
  %621 = vmatprep.subr.bf16.mxu0 0
  %622 = vmatpush1.bf16.msra.mxu0 0
  %623 = vmatprep.subr.bf16.mxu0 0
  %624 = vmatpush1.bf16.msra.mxu0 0
  %625 = vmatprep.subr.bf16.mxu0 0
  %626 = vmatpush1.bf16.msra.mxu0 0
  %627 = vmatprep.mubr.bf16.mxu0 0
  %628 = vmatmul.mubr.bf16.gmra.mrb[0].mxu0 %v593
  %v629 = vpop.f32.mrb[0].mxu0
  %v630 = vadd.f32 0.0, %v629
  %v631 = vpop.f32.mrb[0].mxu0
  %v632 = vpop.f32.mrb[0].mxu0
  %v633 = vpop.f32.mrb[0].mxu0
  %634 = vdwg.mxu0
  %v636 = vrot.slane %v630, 2
  %v638 = vadd.f32 %v181, %v636
  %v639 = vxor.u32 %v638, 2147483648
  %v640 = vmul.f32 %v639, 1.442695
  %v641 = vpow.pop %v640
  %v642 = vadd.f32 %v641, 1.0
  %v643 = vrcp.pop %v642
  %v644 = vmul.f32 1.0, %v643
  %v645 = vtanh.pop %v638
  %v647 = vrot.slane %v491, 2
  %v649 = vmul.f32 %v644, %v647
  %651 = vrot.lane.b32.xlu0 %v645, 64
  %v652 = vpop.permute.xlu0 %651
  %v654 = vmul.f32 %v644, %v652
  %656 = vrot.lane.b32.xlu0 %v654, 32
  %v657 = vpop.permute.xlu0 %656
  %v659 = vadd.f32 %v649, %v657
  %v660 = vtanh.pop %v659
  %662 = vrot.lane.b32.xlu0 %v660, 64
  %v663 = vpop.permute.xlu0 %662
  %v665 = vmul.f32 %v644, %v663
  %667 = vrot.lane.b32.xlu0 %v665, 32
  %v668 = vpop.permute.xlu0 %667
  %vm670 = vcmask 261126
  %671 = vst.msk [vmem:[#allocation3 + $0x8] sm:$0xc0] %vm670, %v668
  %v672 = vpack.c.bf16 %v581, %v581
  %v674 = vrot.slane %v672, 2
  %675 = vrot.lane.b32.xlu0 %v674, 32
  %v676 = vpop.permute.xlu0 %675
  %v678 = vsel %vm63, %v676, 0
  %680 = vmatprep.subr.bf16.mxu0 0
  %681 = vmatpush1.bf16.msra.mxu0 %v34
  %682 = vmatprep.subr.bf16.mxu0 0
  %683 = vmatpush1.bf16.msra.mxu0 %v35
  %684 = vmatprep.subr.bf16.mxu0 0
  %685 = vmatpush1.bf16.msra.mxu0 0
  %686 = vmatprep.subr.bf16.mxu0 0
  %687 = vmatpush1.bf16.msra.mxu0 0
  %688 = vmatprep.subr.bf16.mxu0 0
  %689 = vmatpush1.bf16.msra.mxu0 0
  %690 = vmatprep.subr.bf16.mxu0 0
  %691 = vmatpush1.bf16.msra.mxu0 0
  %692 = vmatprep.subr.bf16.mxu0 0
  %693 = vmatpush1.bf16.msra.mxu0 0
  %694 = vmatprep.subr.bf16.mxu0 0
  %695 = vmatpush1.bf16.msra.mxu0 0
  %696 = vmatprep.subr.bf16.mxu0 0
  %697 = vmatpush1.bf16.msra.mxu0 0
  %698 = vmatprep.subr.bf16.mxu0 0
  %699 = vmatpush1.bf16.msra.mxu0 0
  %700 = vmatprep.subr.bf16.mxu0 0
  %701 = vmatpush1.bf16.msra.mxu0 0
  %702 = vmatprep.subr.bf16.mxu0 0
  %703 = vmatpush1.bf16.msra.mxu0 0
  %704 = vmatprep.subr.bf16.mxu0 0
  %705 = vmatpush1.bf16.msra.mxu0 0
  %706 = vmatprep.subr.bf16.mxu0 0
  %707 = vmatpush1.bf16.msra.mxu0 0
  %708 = vmatprep.subr.bf16.mxu0 0
  %709 = vmatpush1.bf16.msra.mxu0 0
  %710 = vmatprep.subr.bf16.mxu0 0
  %711 = vmatpush1.bf16.msra.mxu0 0
  %712 = vmatprep.mubr.bf16.mxu0 0
  %713 = vmatmul.mubr.bf16.gmra.mrb[0].mxu0 %v678
  %v714 = vpop.f32.mrb[0].mxu0
  %v715 = vadd.f32 0.0, %v714
  %v716 = vpop.f32.mrb[0].mxu0
  %v717 = vpop.f32.mrb[0].mxu0
  %v718 = vpop.f32.mrb[0].mxu0
  %719 = vdwg.mxu0
  %v721 = vrot.slane %v715, 2
  %v723 = vadd.f32 %v175, %v721
  %v724 = vxor.u32 %v723, 2147483648
  %v725 = vmul.f32 %v724, 1.442695
  %v726 = vpow.pop %v725
  %v727 = vadd.f32 %v726, 1.0
  %v728 = vrcp.pop %v727
  %v729 = vmul.f32 1.0, %v728
  %v730 = vtanh.pop %v723
  %v732 = vrot.slane %v575, 6
  %v734 = vmul.f32 %v729, %v732
  %736 = vrot.lane.b32.xlu0 %v730, 64
  %v737 = vpop.permute.xlu0 %736
  %v739 = vmul.f32 %v729, %v737
  %741 = vrot.lane.b32.xlu0 %v739, 32
  %v742 = vpop.permute.xlu0 %741
  %v744 = vadd.f32 %v734, %v742
  %v745 = vtanh.pop %v744
  %747 = vrot.lane.b32.xlu0 %v745, 64
  %v748 = vpop.permute.xlu0 %747
  %v750 = vmul.f32 %v729, %v748
  %752 = vrot.lane.b32.xlu0 %v750, 32
  %v753 = vpop.permute.xlu0 %752
  %755 = vst.msk [vmem:[#allocation2] sm:$0xc0] %vm670, %v753
  %v756 = vpack.c.bf16 %v665, %v665
  %v758 = vrot.slane %v756, 3
  %759 = vrot.lane.b32.xlu0 %v758, 32
  %v760 = vpop.permute.xlu0 %759
  %v762 = vsel %vm63, %v760, 0
  %764 = vmatprep.subr.bf16.mxu0 0
  %765 = vmatpush1.bf16.msra.mxu0 %v40
  %766 = vmatprep.subr.bf16.mxu0 0
  %767 = vmatpush1.bf16.msra.mxu0 %v41
  %768 = vmatprep.subr.bf16.mxu0 0
  %769 = vmatpush1.bf16.msra.mxu0 0
  %770 = vmatprep.subr.bf16.mxu0 0
  %771 = vmatpush1.bf16.msra.mxu0 0
  %772 = vmatprep.subr.bf16.mxu0 0
  %773 = vmatpush1.bf16.msra.mxu0 0
  %774 = vmatprep.subr.bf16.mxu0 0
  %775 = vmatpush1.bf16.msra.mxu0 0
  %776 = vmatprep.subr.bf16.mxu0 0
  %777 = vmatpush1.bf16.msra.mxu0 0
  %778 = vmatprep.subr.bf16.mxu0 0
  %779 = vmatpush1.bf16.msra.mxu0 0
  %780 = vmatprep.subr.bf16.mxu0 0
  %781 = vmatpush1.bf16.msra.mxu0 0
  %782 = vmatprep.subr.bf16.mxu0 0
  %783 = vmatpush1.bf16.msra.mxu0 0
  %784 = vmatprep.subr.bf16.mxu0 0
  %785 = vmatpush1.bf16.msra.mxu0 0
  %786 = vmatprep.subr.bf16.mxu0 0
  %787 = vmatpush1.bf16.msra.mxu0 0
  %788 = vmatprep.subr.bf16.mxu0 0
  %789 = vmatpush1.bf16.msra.mxu0 0
  %790 = vmatprep.subr.bf16.mxu0 0
  %791 = vmatpush1.bf16.msra.mxu0 0
  %792 = vmatprep.subr.bf16.mxu0 0
  %793 = vmatpush1.bf16.msra.mxu0 0
  %794 = vmatprep.subr.bf16.mxu0 0
  %795 = vmatpush1.bf16.msra.mxu0 0
  %796 = vmatprep.mubr.bf16.mxu0 0
  %797 = vmatmul.mubr.bf16.gmra.mrb[0].mxu0 %v762
  %v798 = vpop.f32.mrb[0].mxu0
  %v799 = vadd.f32 0.0, %v798
  %v800 = vpop.f32.mrb[0].mxu0
  %v801 = vpop.f32.mrb[0].mxu0
  %v802 = vpop.f32.mrb[0].mxu0
  %803 = vdwg.mxu0
  %v805 = vrot.slane %v799, 4
  %v807 = vadd.f32 %v181, %v805
  %v808 = vxor.u32 %v807, 2147483648
  %v809 = vmul.f32 %v808, 1.442695
  %v810 = vpow.pop %v809
  %v811 = vadd.f32 %v810, 1.0
  %v812 = vrcp.pop %v811
  %v813 = vmul.f32 1.0, %v812
  %v814 = vtanh.pop %v807
  %v816 = vrot.slane %v659, 2
  %v818 = vmul.f32 %v813, %v816
  %820 = vrot.lane.b32.xlu0 %v814, 64
  %v821 = vpop.permute.xlu0 %820
  %v823 = vmul.f32 %v813, %v821
  %825 = vrot.lane.b32.xlu0 %v823, 32
  %v826 = vpop.permute.xlu0 %825
  %v828 = vadd.f32 %v818, %v826
  %v829 = vtanh.pop %v828
  %831 = vrot.lane.b32.xlu0 %v829, 64
  %v832 = vpop.permute.xlu0 %831
  %v834 = vmul.f32 %v813, %v832
  %836 = vrot.lane.b32.xlu0 %v834, 32
  %v837 = vpop.permute.xlu0 %836
  %839 = vst.msk [vmem:[#allocation3 + $0x8] sm:$0x30] %vm586, %v837
  %v840 = vpack.c.bf16 %v750, %v750
  %v842 = vrot.slane %v840, 3
  %843 = vrot.lane.b32.xlu0 %v842, 32
  %v844 = vpop.permute.xlu0 %843
  %v846 = vsel %vm63, %v844, 0
  %848 = vmatprep.subr.bf16.mxu0 0
  %849 = vmatpush1.bf16.msra.mxu0 %v34
  %850 = vmatprep.subr.bf16.mxu0 0
  %851 = vmatpush1.bf16.msra.mxu0 %v35
  %852 = vmatprep.subr.bf16.mxu0 0
  %853 = vmatpush1.bf16.msra.mxu0 0
  %854 = vmatprep.subr.bf16.mxu0 0
  %855 = vmatpush1.bf16.msra.mxu0 0
  %856 = vmatprep.subr.bf16.mxu0 0
  %857 = vmatpush1.bf16.msra.mxu0 0
  %858 = vmatprep.subr.bf16.mxu0 0
  %859 = vmatpush1.bf16.msra.mxu0 0
  %860 = vmatprep.subr.bf16.mxu0 0
  %861 = vmatpush1.bf16.msra.mxu0 0
  %862 = vmatprep.subr.bf16.mxu0 0
  %863 = vmatpush1.bf16.msra.mxu0 0
  %864 = vmatprep.subr.bf16.mxu0 0
  %865 = vmatpush1.bf16.msra.mxu0 0
  %866 = vmatprep.subr.bf16.mxu0 0
  %867 = vmatpush1.bf16.msra.mxu0 0
  %868 = vmatprep.subr.bf16.mxu0 0
  %869 = vmatpush1.bf16.msra.mxu0 0
  %870 = vmatprep.subr.bf16.mxu0 0
  %871 = vmatpush1.bf16.msra.mxu0 0
  %872 = vmatprep.subr.bf16.mxu0 0
  %873 = vmatpush1.bf16.msra.mxu0 0
  %874 = vmatprep.subr.bf16.mxu0 0
  %875 = vmatpush1.bf16.msra.mxu0 0
  %876 = vmatprep.subr.bf16.mxu0 0
  %877 = vmatpush1.bf16.msra.mxu0 0
  %878 = vmatprep.subr.bf16.mxu0 0
  %879 = vmatpush1.bf16.msra.mxu0 0
  %880 = vmatprep.mubr.bf16.mxu0 0
  %881 = vmatmul.mubr.bf16.gmra.mrb[0].mxu0 %v846
  %v882 = vpop.f32.mrb[0].mxu0
  %v883 = vadd.f32 0.0, %v882
  %v884 = vpop.f32.mrb[0].mxu0
  %v885 = vpop.f32.mrb[0].mxu0
  %v886 = vpop.f32.mrb[0].mxu0
  %887 = vdwg.mxu0
  %v888 = vadd.f32 %v179, %v883
  %v889 = vxor.u32 %v888, 2147483648
  %v890 = vmul.f32 %v889, 1.442695
  %v891 = vpow.pop %v890
  %v892 = vadd.f32 %v891, 1.0
  %v893 = vrcp.pop %v892
  %v894 = vmul.f32 1.0, %v893
  %v895 = vtanh.pop %v888
  %v897 = vrot.slane %v744, 6
  %v899 = vmul.f32 %v894, %v897
  %901 = vrot.lane.b32.xlu0 %v895, 64
  %v902 = vpop.permute.xlu0 %901
  %v904 = vmul.f32 %v894, %v902
  %906 = vrot.lane.b32.xlu0 %v904, 32
  %v907 = vpop.permute.xlu0 %906
  %v909 = vadd.f32 %v899, %v907
  %v910 = vtanh.pop %v909
  %912 = vrot.lane.b32.xlu0 %v910, 64
  %v913 = vpop.permute.xlu0 %912
  %v915 = vmul.f32 %v894, %v913
  %917 = vrot.lane.b32.xlu0 %v915, 32
  %v918 = vpop.permute.xlu0 %917
  %920 = vst.msk [vmem:[#allocation2 + $0x8] sm:$0x3] %vm263, %v918
  %v921 = vpack.c.bf16 %v834, %v834
  %v923 = vrot.slane %v921, 2
  %924 = vrot.lane.b32.xlu0 %v923, 32
  %v925 = vpop.permute.xlu0 %924
  %v927 = vsel %vm63, %v925, 0
  %929 = vmatprep.subr.bf16.mxu0 0
  %930 = vmatpush1.bf16.msra.mxu0 %v40
  %931 = vmatprep.subr.bf16.mxu0 0
  %932 = vmatpush1.bf16.msra.mxu0 %v41
  %933 = vmatprep.subr.bf16.mxu0 0
  %934 = vmatpush1.bf16.msra.mxu0 0
  %935 = vmatprep.subr.bf16.mxu0 0
  %936 = vmatpush1.bf16.msra.mxu0 0
  %937 = vmatprep.subr.bf16.mxu0 0
  %938 = vmatpush1.bf16.msra.mxu0 0
  %939 = vmatprep.subr.bf16.mxu0 0
  %940 = vmatpush1.bf16.msra.mxu0 0
  %941 = vmatprep.subr.bf16.mxu0 0
  %942 = vmatpush1.bf16.msra.mxu0 0
  %943 = vmatprep.subr.bf16.mxu0 0
  %944 = vmatpush1.bf16.msra.mxu0 0
  %945 = vmatprep.subr.bf16.mxu0 0
  %946 = vmatpush1.bf16.msra.mxu0 0
  %947 = vmatprep.subr.bf16.mxu0 0
  %948 = vmatpush1.bf16.msra.mxu0 0
  %949 = vmatprep.subr.bf16.mxu0 0
  %950 = vmatpush1.bf16.msra.mxu0 0
  %951 = vmatprep.subr.bf16.mxu0 0
  %952 = vmatpush1.bf16.msra.mxu0 0
  %953 = vmatprep.subr.bf16.mxu0 0
  %954 = vmatpush1.bf16.msra.mxu0 0
  %955 = vmatprep.subr.bf16.mxu0 0
  %956 = vmatpush1.bf16.msra.mxu0 0
  %957 = vmatprep.subr.bf16.mxu0 0
  %958 = vmatpush1.bf16.msra.mxu0 0
  %959 = vmatprep.subr.bf16.mxu0 0
  %960 = vmatpush1.bf16.msra.mxu0 0
  %961 = vmatprep.mubr.bf16.mxu0 0
  %962 = vmatmul.mubr.bf16.gmra.mrb[0].mxu0 %v927
  %v963 = vpop.f32.mrb[0].mxu0
  %v964 = vadd.f32 0.0, %v963
  %v965 = vpop.f32.mrb[0].mxu0
  %v966 = vpop.f32.mrb[0].mxu0
  %v967 = vpop.f32.mrb[0].mxu0
  %968 = vdwg.mxu0
  %v970 = vrot.slane %v964, 6
  %v972 = vadd.f32 %v181, %v970
  %v973 = vxor.u32 %v972, 2147483648
  %v974 = vmul.f32 %v973, 1.442695
  %v975 = vpow.pop %v974
  %v976 = vadd.f32 %v975, 1.0
  %v977 = vrcp.pop %v976
  %v978 = vmul.f32 1.0, %v977
  %v979 = vtanh.pop %v972
  %v981 = vrot.slane %v828, 2
  %v983 = vmul.f32 %v978, %v981
  %985 = vrot.lane.b32.xlu0 %v979, 64
  %v986 = vpop.permute.xlu0 %985
  %v988 = vmul.f32 %v978, %v986
  %990 = vrot.lane.b32.xlu0 %v988, 32
  %v991 = vpop.permute.xlu0 %990
  %v993 = vadd.f32 %v983, %v991
  %v994 = vtanh.pop %v993
  %996 = vrot.lane.b32.xlu0 %v994, 64
  %v997 = vpop.permute.xlu0 %996
  %v999 = vmul.f32 %v978, %v997
  %1001 = vrot.lane.b32.xlu0 %v999, 32
  %v1002 = vpop.permute.xlu0 %1001
  %1004 = vst.msk [vmem:[#allocation3 + $0x8] sm:$0xc] %vm337, %v1002
  %v1005 = vpack.c.bf16 %v915, %v915
  %1007 = vrot.lane.b32.xlu0 %v1005, 32
  %v1008 = vpop.permute.xlu0 %1007
  %v1010 = vsel %vm63, %v1008, 0
  %1012 = vmatprep.subr.bf16.mxu0 0
  %1013 = vmatpush1.bf16.msra.mxu0 %v34
  %1014 = vmatprep.subr.bf16.mxu0 0
  %1015 = vmatpush1.bf16.msra.mxu0 %v35
  %1016 = vmatprep.subr.bf16.mxu0 0
  %1017 = vmatpush1.bf16.msra.mxu0 0
  %1018 = vmatprep.subr.bf16.mxu0 0
  %1019 = vmatpush1.bf16.msra.mxu0 0
  %1020 = vmatprep.subr.bf16.mxu0 0
  %1021 = vmatpush1.bf16.msra.mxu0 0
  %1022 = vmatprep.subr.bf16.mxu0 0
  %1023 = vmatpush1.bf16.msra.mxu0 0
  %1024 = vmatprep.subr.bf16.mxu0 0
  %1025 = vmatpush1.bf16.msra.mxu0 0
  %1026 = vmatprep.subr.bf16.mxu0 0
  %1027 = vmatpush1.bf16.msra.mxu0 0
  %1028 = vmatprep.subr.bf16.mxu0 0
  %1029 = vmatpush1.bf16.msra.mxu0 0
  %1030 = vmatprep.subr.bf16.mxu0 0
  %1031 = vmatpush1.bf16.msra.mxu0 0
  %1032 = vmatprep.subr.bf16.mxu0 0
  %1033 = vmatpush1.bf16.msra.mxu0 0
  %1034 = vmatprep.subr.bf16.mxu0 0
  %1035 = vmatpush1.bf16.msra.mxu0 0
  %1036 = vmatprep.subr.bf16.mxu0 0
  %1037 = vmatpush1.bf16.msra.mxu0 0
  %1038 = vmatprep.subr.bf16.mxu0 0
  %1039 = vmatpush1.bf16.msra.mxu0 0
  %1040 = vmatprep.subr.bf16.mxu0 0
  %1041 = vmatpush1.bf16.msra.mxu0 0
  %1042 = vmatprep.subr.bf16.mxu0 0
  %1043 = vmatpush1.bf16.msra.mxu0 0
  %1044 = vmatprep.mubr.bf16.mxu0 0
  %1045 = vmatmul.mubr.bf16.gmra.mrb[0].mxu0 %v1010
  %v1046 = vpop.f32.mrb[0].mxu0
  %v1047 = vadd.f32 0.0, %v1046
  %v1048 = vpop.f32.mrb[0].mxu0
  %v1049 = vpop.f32.mrb[0].mxu0
  %v1050 = vpop.f32.mrb[0].mxu0
  %1051 = vdwg.mxu0
  %v1053 = vrot.slane %v1047, 6
  %v1055 = vadd.f32 %v179, %v1053
  %v1056 = vxor.u32 %v1055, 2147483648
  %v1057 = vmul.f32 %v1056, 1.442695
  %v1058 = vpow.pop %v1057
  %v1059 = vadd.f32 %v1058, 1.0
  %v1060 = vrcp.pop %v1059
  %v1061 = vmul.f32 1.0, %v1060
  %v1062 = vtanh.pop %v1055
  %v1064 = vrot.slane %v909, 6
  %v1066 = vmul.f32 %v1061, %v1064
  %1068 = vrot.lane.b32.xlu0 %v1062, 64
  %v1069 = vpop.permute.xlu0 %1068
  %v1071 = vmul.f32 %v1061, %v1069
  %1073 = vrot.lane.b32.xlu0 %v1071, 32
  %v1074 = vpop.permute.xlu0 %1073
  %v1076 = vadd.f32 %v1066, %v1074
  %v1077 = vtanh.pop %v1076
  %1079 = vrot.lane.b32.xlu0 %v1077, 64
  %v1080 = vpop.permute.xlu0 %1079
  %v1082 = vmul.f32 %v1061, %v1080
  %1084 = vrot.lane.b32.xlu0 %v1082, 32
  %v1085 = vpop.permute.xlu0 %1084
  %1087 = vst.msk [vmem:[#allocation2 + $0x8] sm:$0xc] %vm337, %v1085
  %v1088 = vpack.c.bf16 %v999, %v999
  %v1090 = vrot.slane %v1088, 1
  %1091 = vrot.lane.b32.xlu0 %v1090, 32
  %v1092 = vpop.permute.xlu0 %1091
  %v1094 = vsel %vm63, %v1092, 0
  %1096 = vmatprep.subr.bf16.mxu0 0
  %1097 = vmatpush1.bf16.msra.mxu0 %v40
  %1098 = vmatprep.subr.bf16.mxu0 0
  %1099 = vmatpush1.bf16.msra.mxu0 %v41
  %1100 = vmatprep.subr.bf16.mxu0 0
  %1101 = vmatpush1.bf16.msra.mxu0 0
  %1102 = vmatprep.subr.bf16.mxu0 0
  %1103 = vmatpush1.bf16.msra.mxu0 0
  %1104 = vmatprep.subr.bf16.mxu0 0
  %1105 = vmatpush1.bf16.msra.mxu0 0
  %1106 = vmatprep.subr.bf16.mxu0 0
  %1107 = vmatpush1.bf16.msra.mxu0 0
  %1108 = vmatprep.subr.bf16.mxu0 0
  %1109 = vmatpush1.bf16.msra.mxu0 0
  %1110 = vmatprep.subr.bf16.mxu0 0
  %1111 = vmatpush1.bf16.msra.mxu0 0
  %1112 = vmatprep.subr.bf16.mxu0 0
  %1113 = vmatpush1.bf16.msra.mxu0 0
  %1114 = vmatprep.subr.bf16.mxu0 0
  %1115 = vmatpush1.bf16.msra.mxu0 0
  %1116 = vmatprep.subr.bf16.mxu0 0
  %1117 = vmatpush1.bf16.msra.mxu0 0
  %1118 = vmatprep.subr.bf16.mxu0 0
  %1119 = vmatpush1.bf16.msra.mxu0 0
  %1120 = vmatprep.subr.bf16.mxu0 0
  %1121 = vmatpush1.bf16.msra.mxu0 0
  %1122 = vmatprep.subr.bf16.mxu0 0
  %1123 = vmatpush1.bf16.msra.mxu0 0
  %1124 = vmatprep.subr.bf16.mxu0 0
  %1125 = vmatpush1.bf16.msra.mxu0 0
  %1126 = vmatprep.subr.bf16.mxu0 0
  %1127 = vmatpush1.bf16.msra.mxu0 0
  %1128 = vmatprep.mubr.bf16.mxu0 0
  %1129 = vmatmul.mubr.bf16.gmra.mrb[0].mxu0 %v1094
  %v1130 = vpop.f32.mrb[0].mxu0
  %v1131 = vadd.f32 0.0, %v1130
  %v1132 = vpop.f32.mrb[0].mxu0
  %v1133 = vpop.f32.mrb[0].mxu0
  %v1134 = vpop.f32.mrb[0].mxu0
  %1135 = vdwg.mxu0
  %v1136 = vadd.f32 %v181, %v1131
  %v1137 = vxor.u32 %v1136, 2147483648
  %v1138 = vmul.f32 %v1137, 1.442695
  %v1139 = vpow.pop %v1138
  %v1140 = vadd.f32 %v1139, 1.0
  %v1141 = vrcp.pop %v1140
  %v1142 = vmul.f32 1.0, %v1141
  %v1143 = vtanh.pop %v1136
  %v1145 = vrot.slane %v993, 2
  %v1147 = vmul.f32 %v1142, %v1145
  %1149 = vrot.lane.b32.xlu0 %v1143, 64
  %v1150 = vpop.permute.xlu0 %1149
  %v1152 = vmul.f32 %v1142, %v1150
  %1154 = vrot.lane.b32.xlu0 %v1152, 32
  %v1155 = vpop.permute.xlu0 %1154
  %v1157 = vadd.f32 %v1147, %v1155
  %v1158 = vtanh.pop %v1157
  %1160 = vrot.lane.b32.xlu0 %v1158, 64
  %v1161 = vpop.permute.xlu0 %1160
  %v1163 = vmul.f32 %v1142, %v1161
  %1165 = vrot.lane.b32.xlu0 %v1163, 32
  %v1166 = vpop.permute.xlu0 %1165
  %1168 = vst.msk [vmem:[#allocation3 + $0x8] sm:$0x3] %vm263, %v1166
  %v1169 = vpack.c.bf16 %v1082, %v1082
  %v1171 = vrot.slane %v1169, 1
  %1172 = vrot.lane.b32.xlu0 %v1171, 32
  %v1173 = vpop.permute.xlu0 %1172
  %v1175 = vsel %vm63, %v1173, 0
  %1177 = vmatprep.subr.bf16.mxu0 0
  %1178 = vmatpush1.bf16.msra.mxu0 %v34
  %1179 = vmatprep.subr.bf16.mxu0 0
  %1180 = vmatpush1.bf16.msra.mxu0 %v35
  %1181 = vmatprep.subr.bf16.mxu0 0
  %1182 = vmatpush1.bf16.msra.mxu0 0
  %1183 = vmatprep.subr.bf16.mxu0 0
  %1184 = vmatpush1.bf16.msra.mxu0 0
  %1185 = vmatprep.subr.bf16.mxu0 0
  %1186 = vmatpush1.bf16.msra.mxu0 0
  %1187 = vmatprep.subr.bf16.mxu0 0
  %1188 = vmatpush1.bf16.msra.mxu0 0
  %1189 = vmatprep.subr.bf16.mxu0 0
  %1190 = vmatpush1.bf16.msra.mxu0 0
  %1191 = vmatprep.subr.bf16.mxu0 0
  %1192 = vmatpush1.bf16.msra.mxu0 0
  %1193 = vmatprep.subr.bf16.mxu0 0
  %1194 = vmatpush1.bf16.msra.mxu0 0
  %1195 = vmatprep.subr.bf16.mxu0 0
  %1196 = vmatpush1.bf16.msra.mxu0 0
  %1197 = vmatprep.subr.bf16.mxu0 0
  %1198 = vmatpush1.bf16.msra.mxu0 0
  %1199 = vmatprep.subr.bf16.mxu0 0
  %1200 = vmatpush1.bf16.msra.mxu0 0
  %1201 = vmatprep.subr.bf16.mxu0 0
  %1202 = vmatpush1.bf16.msra.mxu0 0
  %1203 = vmatprep.subr.bf16.mxu0 0
  %1204 = vmatpush1.bf16.msra.mxu0 0
  %1205 = vmatprep.subr.bf16.mxu0 0
  %1206 = vmatpush1.bf16.msra.mxu0 0
  %1207 = vmatprep.subr.bf16.mxu0 0
  %1208 = vmatpush1.bf16.msra.mxu0 0
  %1209 = vmatprep.mubr.bf16.mxu0 0
  %1210 = vmatmul.mubr.bf16.gmra.mrb[0].mxu0 %v1175
  %v1211 = vpop.f32.mrb[0].mxu0
  %v1212 = vadd.f32 0.0, %v1211
  %v1213 = vpop.f32.mrb[0].mxu0
  %v1214 = vpop.f32.mrb[0].mxu0
  %v1215 = vpop.f32.mrb[0].mxu0
  %1216 = vdwg.mxu0
  %v1218 = vrot.slane %v1212, 4
  %v1220 = vadd.f32 %v179, %v1218
  %v1221 = vxor.u32 %v1220, 2147483648
  %v1222 = vmul.f32 %v1221, 1.442695
  %v1223 = vpow.pop %v1222
  %v1224 = vadd.f32 %v1223, 1.0
  %v1225 = vrcp.pop %v1224
  %v1226 = vmul.f32 1.0, %v1225
  %v1227 = vtanh.pop %v1220
  %v1229 = vrot.slane %v1076, 6
  %v1231 = vmul.f32 %v1226, %v1229
  %1233 = vrot.lane.b32.xlu0 %v1227, 64
  %v1234 = vpop.permute.xlu0 %1233
  %v1236 = vmul.f32 %v1226, %v1234
  %1238 = vrot.lane.b32.xlu0 %v1236, 32
  %v1239 = vpop.permute.xlu0 %1238
  %v1241 = vadd.f32 %v1231, %v1239
  %v1242 = vtanh.pop %v1241
  %1244 = vrot.lane.b32.xlu0 %v1242, 64
  %v1245 = vpop.permute.xlu0 %1244
  %v1247 = vmul.f32 %v1226, %v1245
  %1249 = vrot.lane.b32.xlu0 %v1247, 32
  %v1250 = vpop.permute.xlu0 %1249
  %1252 = vst.msk [vmem:[#allocation2 + $0x8] sm:$0x30] %vm586, %v1250
  %v1253 = vpack.c.bf16 %v1163, %v1163
  %1255 = vrot.lane.b32.xlu0 %v1253, 32
  %v1256 = vpop.permute.xlu0 %1255
  %v1258 = vsel %vm63, %v1256, 0
  %1260 = vmatprep.subr.bf16.mxu0 0
  %1261 = vmatpush1.bf16.msra.mxu0 %v40
  %1262 = vmatprep.subr.bf16.mxu0 0
  %1263 = vmatpush1.bf16.msra.mxu0 %v41
  %1264 = vmatprep.subr.bf16.mxu0 0
  %1265 = vmatpush1.bf16.msra.mxu0 0
  %1266 = vmatprep.subr.bf16.mxu0 0
  %1267 = vmatpush1.bf16.msra.mxu0 0
  %1268 = vmatprep.subr.bf16.mxu0 0
  %1269 = vmatpush1.bf16.msra.mxu0 0
  %1270 = vmatprep.subr.bf16.mxu0 0
  %1271 = vmatpush1.bf16.msra.mxu0 0
  %1272 = vmatprep.subr.bf16.mxu0 0
  %1273 = vmatpush1.bf16.msra.mxu0 0
  %1274 = vmatprep.subr.bf16.mxu0 0
  %1275 = vmatpush1.bf16.msra.mxu0 0
  %1276 = vmatprep.subr.bf16.mxu0 0
  %1277 = vmatpush1.bf16.msra.mxu0 0
  %1278 = vmatprep.subr.bf16.mxu0 0
  %1279 = vmatpush1.bf16.msra.mxu0 0
  %1280 = vmatprep.subr.bf16.mxu0 0
  %1281 = vmatpush1.bf16.msra.mxu0 0
  %1282 = vmatprep.subr.bf16.mxu0 0
  %1283 = vmatpush1.bf16.msra.mxu0 0
  %1284 = vmatprep.subr.bf16.mxu0 0
  %1285 = vmatpush1.bf16.msra.mxu0 0
  %1286 = vmatprep.subr.bf16.mxu0 0
  %1287 = vmatpush1.bf16.msra.mxu0 0
  %1288 = vmatprep.subr.bf16.mxu0 0
  %1289 = vmatpush1.bf16.msra.mxu0 0
  %1290 = vmatprep.subr.bf16.mxu0 0
  %1291 = vmatpush1.bf16.msra.mxu0 0
  %1292 = vmatprep.mubr.bf16.mxu0 0
  %1293 = vmatmul.mubr.bf16.gmra.mrb[0].mxu0 %v1258
  %v1294 = vpop.f32.mrb[0].mxu0
  %v1295 = vadd.f32 0.0, %v1294
  %v1296 = vpop.f32.mrb[0].mxu0
  %v1297 = vpop.f32.mrb[0].mxu0
  %v1298 = vpop.f32.mrb[0].mxu0
  %1299 = vdwg.mxu0
  %v1301 = vrot.slane %v1295, 2
  %v1303 = vadd.f32 %v177, %v1301
  %v1304 = vxor.u32 %v1303, 2147483648
  %v1305 = vmul.f32 %v1304, 1.442695
  %v1306 = vpow.pop %v1305
  %v1307 = vadd.f32 %v1306, 1.0
  %v1308 = vrcp.pop %v1307
  %v1309 = vmul.f32 1.0, %v1308
  %v1310 = vtanh.pop %v1303
  %v1312 = vrot.slane %v1157, 2
  %v1314 = vmul.f32 %v1309, %v1312
  %1316 = vrot.lane.b32.xlu0 %v1310, 64
  %v1317 = vpop.permute.xlu0 %1316
  %v1319 = vmul.f32 %v1309, %v1317
  %1321 = vrot.lane.b32.xlu0 %v1319, 32
  %v1322 = vpop.permute.xlu0 %1321
  %v1324 = vadd.f32 %v1314, %v1322
  %v1325 = vtanh.pop %v1324
  %1327 = vrot.lane.b32.xlu0 %v1325, 64
  %v1328 = vpop.permute.xlu0 %1327
  %v1330 = vmul.f32 %v1309, %v1328
  %1332 = vrot.lane.b32.xlu0 %v1330, 32
  %v1333 = vpop.permute.xlu0 %1332
  %1335 = vst.msk [vmem:[#allocation3] sm:$0xc0] %vm670, %v1333
  %v1336 = vpack.c.bf16 %v1247, %v1247
  %v1338 = vrot.slane %v1336, 2
  %1339 = vrot.lane.b32.xlu0 %v1338, 32
  %v1340 = vpop.permute.xlu0 %1339
  %v1342 = vsel %vm63, %v1340, 0
  %1344 = vmatprep.subr.bf16.mxu0 0
  %1345 = vmatpush1.bf16.msra.mxu0 %v34
  %1346 = vmatprep.subr.bf16.mxu0 0
  %1347 = vmatpush1.bf16.msra.mxu0 %v35
  %1348 = vmatprep.subr.bf16.mxu0 0
  %1349 = vmatpush1.bf16.msra.mxu0 0
  %1350 = vmatprep.subr.bf16.mxu0 0
  %1351 = vmatpush1.bf16.msra.mxu0 0
  %1352 = vmatprep.subr.bf16.mxu0 0
  %1353 = vmatpush1.bf16.msra.mxu0 0
  %1354 = vmatprep.subr.bf16.mxu0 0
  %1355 = vmatpush1.bf16.msra.mxu0 0
  %1356 = vmatprep.subr.bf16.mxu0 0
  %1357 = vmatpush1.bf16.msra.mxu0 0
  %1358 = vmatprep.subr.bf16.mxu0 0
  %1359 = vmatpush1.bf16.msra.mxu0 0
  %1360 = vmatprep.subr.bf16.mxu0 0
  %1361 = vmatpush1.bf16.msra.mxu0 0
  %1362 = vmatprep.subr.bf16.mxu0 0
  %1363 = vmatpush1.bf16.msra.mxu0 0
  %1364 = vmatprep.subr.bf16.mxu0 0
  %1365 = vmatpush1.bf16.msra.mxu0 0
  %1366 = vmatprep.subr.bf16.mxu0 0
  %1367 = vmatpush1.bf16.msra.mxu0 0
  %1368 = vmatprep.subr.bf16.mxu0 0
  %1369 = vmatpush1.bf16.msra.mxu0 0
  %1370 = vmatprep.subr.bf16.mxu0 0
  %1371 = vmatpush1.bf16.msra.mxu0 0
  %1372 = vmatprep.subr.bf16.mxu0 0
  %1373 = vmatpush1.bf16.msra.mxu0 0
  %1374 = vmatprep.subr.bf16.mxu0 0
  %1375 = vmatpush1.bf16.msra.mxu0 0
  %1376 = vmatprep.mubr.bf16.mxu0 0
  %1377 = vmatmul.mubr.bf16.gmra.mrb[0].mxu0 %v1342
  %v1378 = vpop.f32.mrb[0].mxu0
  %v1379 = vadd.f32 0.0, %v1378
  %v1380 = vpop.f32.mrb[0].mxu0
  %v1381 = vpop.f32.mrb[0].mxu0
  %v1382 = vpop.f32.mrb[0].mxu0
  %1383 = vdwg.mxu0
  %v1385 = vrot.slane %v1379, 2
  %v1387 = vadd.f32 %v179, %v1385
  %v1388 = vxor.u32 %v1387, 2147483648
  %v1389 = vmul.f32 %v1388, 1.442695
  %v1390 = vpow.pop %v1389
  %v1391 = vadd.f32 %v1390, 1.0
  %v1392 = vrcp.pop %v1391
  %v1393 = vmul.f32 1.0, %v1392
  %v1394 = vtanh.pop %v1387
  %v1396 = vrot.slane %v1241, 6
  %v1398 = vmul.f32 %v1393, %v1396
  %1400 = vrot.lane.b32.xlu0 %v1394, 64
  %v1401 = vpop.permute.xlu0 %1400
  %v1403 = vmul.f32 %v1393, %v1401
  %1405 = vrot.lane.b32.xlu0 %v1403, 32
  %v1406 = vpop.permute.xlu0 %1405
  %v1408 = vadd.f32 %v1398, %v1406
  %v1409 = vtanh.pop %v1408
  %1411 = vrot.lane.b32.xlu0 %v1409, 64
  %v1412 = vpop.permute.xlu0 %1411
  %v1414 = vmul.f32 %v1393, %v1412
  %1416 = vrot.lane.b32.xlu0 %v1414, 32
  %v1417 = vpop.permute.xlu0 %1416
  %1419 = vst.msk [vmem:[#allocation2 + $0x8] sm:$0xc0] %vm670, %v1417
  %v1420 = vpack.c.bf16 %v1330, %v1330
  %v1422 = vrot.slane %v1420, 3
  %1423 = vrot.lane.b32.xlu0 %v1422, 32
  %v1424 = vpop.permute.xlu0 %1423
  %v1426 = vsel %vm63, %v1424, 0
  %1428 = vmatprep.subr.bf16.mxu0 0
  %1429 = vmatpush1.bf16.msra.mxu0 %v40
  %1430 = vmatprep.subr.bf16.mxu0 0
  %1431 = vmatpush1.bf16.msra.mxu0 %v41
  %1432 = vmatprep.subr.bf16.mxu0 0
  %1433 = vmatpush1.bf16.msra.mxu0 0
  %1434 = vmatprep.subr.bf16.mxu0 0
  %1435 = vmatpush1.bf16.msra.mxu0 0
  %1436 = vmatprep.subr.bf16.mxu0 0
  %1437 = vmatpush1.bf16.msra.mxu0 0
  %1438 = vmatprep.subr.bf16.mxu0 0
  %1439 = vmatpush1.bf16.msra.mxu0 0
  %1440 = vmatprep.subr.bf16.mxu0 0
  %1441 = vmatpush1.bf16.msra.mxu0 0
  %1442 = vmatprep.subr.bf16.mxu0 0
  %1443 = vmatpush1.bf16.msra.mxu0 0
  %1444 = vmatprep.subr.bf16.mxu0 0
  %1445 = vmatpush1.bf16.msra.mxu0 0
  %1446 = vmatprep.subr.bf16.mxu0 0
  %1447 = vmatpush1.bf16.msra.mxu0 0
  %1448 = vmatprep.subr.bf16.mxu0 0
  %1449 = vmatpush1.bf16.msra.mxu0 0
  %1450 = vmatprep.subr.bf16.mxu0 0
  %1451 = vmatpush1.bf16.msra.mxu0 0
  %1452 = vmatprep.subr.bf16.mxu0 0
  %1453 = vmatpush1.bf16.msra.mxu0 0
  %1454 = vmatprep.subr.bf16.mxu0 0
  %1455 = vmatpush1.bf16.msra.mxu0 0
  %1456 = vmatprep.subr.bf16.mxu0 0
  %1457 = vmatpush1.bf16.msra.mxu0 0
  %1458 = vmatprep.subr.bf16.mxu0 0
  %1459 = vmatpush1.bf16.msra.mxu0 0
  %1460 = vmatprep.mubr.bf16.mxu0 0
  %1461 = vmatmul.mubr.bf16.gmra.mrb[0].mxu0 %v1426
  %v1462 = vpop.f32.mrb[0].mxu0
  %v1463 = vadd.f32 0.0, %v1462
  %v1464 = vpop.f32.mrb[0].mxu0
  %v1465 = vpop.f32.mrb[0].mxu0
  %v1466 = vpop.f32.mrb[0].mxu0
  %1467 = vdwg.mxu0
  %v1469 = vrot.slane %v1463, 4
  %v1471 = vadd.f32 %v177, %v1469
  %v1472 = vxor.u32 %v1471, 2147483648
  %v1473 = vmul.f32 %v1472, 1.442695
  %v1474 = vpow.pop %v1473
  %v1475 = vadd.f32 %v1474, 1.0
  %v1476 = vrcp.pop %v1475
  %v1477 = vmul.f32 1.0, %v1476
  %v1478 = vtanh.pop %v1471
  %v1480 = vrot.slane %v1324, 2
  %v1482 = vmul.f32 %v1477, %v1480
  %1484 = vrot.lane.b32.xlu0 %v1478, 64
  %v1485 = vpop.permute.xlu0 %1484
  %v1487 = vmul.f32 %v1477, %v1485
  %1489 = vrot.lane.b32.xlu0 %v1487, 32
  %v1490 = vpop.permute.xlu0 %1489
  %v1492 = vadd.f32 %v1482, %v1490
  %v1493 = vtanh.pop %v1492
  %1495 = vrot.lane.b32.xlu0 %v1493, 64
  %v1496 = vpop.permute.xlu0 %1495
  %v1498 = vmul.f32 %v1477, %v1496
  %1500 = vrot.lane.b32.xlu0 %v1498, 32
  %v1501 = vpop.permute.xlu0 %1500
  %1503 = vst.msk [vmem:[#allocation3] sm:$0x30] %vm586, %v1501
  %v1504 = vpack.c.bf16 %v1414, %v1414
  %v1506 = vrot.slane %v1504, 3
  %1507 = vrot.lane.b32.xlu0 %v1506, 32
  %v1508 = vpop.permute.xlu0 %1507
  %v1510 = vsel %vm63, %v1508, 0
  %1512 = vmatprep.subr.bf16.mxu0 0
  %1513 = vmatpush1.bf16.msra.mxu0 %v34
  %1514 = vmatprep.subr.bf16.mxu0 0
  %1515 = vmatpush1.bf16.msra.mxu0 %v35
  %1516 = vmatprep.subr.bf16.mxu0 0
  %1517 = vmatpush1.bf16.msra.mxu0 0
  %1518 = vmatprep.subr.bf16.mxu0 0
  %1519 = vmatpush1.bf16.msra.mxu0 0
  %1520 = vmatprep.subr.bf16.mxu0 0
  %1521 = vmatpush1.bf16.msra.mxu0 0
  %1522 = vmatprep.subr.bf16.mxu0 0
  %1523 = vmatpush1.bf16.msra.mxu0 0
  %1524 = vmatprep.subr.bf16.mxu0 0
  %1525 = vmatpush1.bf16.msra.mxu0 0
  %1526 = vmatprep.subr.bf16.mxu0 0
  %1527 = vmatpush1.bf16.msra.mxu0 0
  %1528 = vmatprep.subr.bf16.mxu0 0
  %1529 = vmatpush1.bf16.msra.mxu0 0
  %1530 = vmatprep.subr.bf16.mxu0 0
  %1531 = vmatpush1.bf16.msra.mxu0 0
  %1532 = vmatprep.subr.bf16.mxu0 0
  %1533 = vmatpush1.bf16.msra.mxu0 0
  %1534 = vmatprep.subr.bf16.mxu0 0
  %1535 = vmatpush1.bf16.msra.mxu0 0
  %1536 = vmatprep.subr.bf16.mxu0 0
  %1537 = vmatpush1.bf16.msra.mxu0 0
  %1538 = vmatprep.subr.bf16.mxu0 0
  %1539 = vmatpush1.bf16.msra.mxu0 0
  %1540 = vmatprep.subr.bf16.mxu0 0
  %1541 = vmatpush1.bf16.msra.mxu0 0
  %1542 = vmatprep.subr.bf16.mxu0 0
  %1543 = vmatpush1.bf16.msra.mxu0 0
  %1544 = vmatprep.mubr.bf16.mxu0 0
  %1545 = vmatmul.mubr.bf16.gmra.mrb[0].mxu0 %v1510
  %v1546 = vpop.f32.mrb[0].mxu0
  %v1547 = vadd.f32 0.0, %v1546
  %v1548 = vpop.f32.mrb[0].mxu0
  %v1549 = vpop.f32.mrb[0].mxu0
  %v1550 = vpop.f32.mrb[0].mxu0
  %1551 = vdwg.mxu0
  %v1552 = vadd.f32 %v185, %v1547
  %v1553 = vxor.u32 %v1552, 2147483648
  %v1554 = vmul.f32 %v1553, 1.442695
  %v1555 = vpow.pop %v1554
  %v1556 = vadd.f32 %v1555, 1.0
  %v1557 = vrcp.pop %v1556
  %v1558 = vmul.f32 1.0, %v1557
  %v1559 = vtanh.pop %v1552
  %v1561 = vrot.slane %v1408, 6
  %v1563 = vmul.f32 %v1558, %v1561
  %1565 = vrot.lane.b32.xlu0 %v1559, 64
  %v1566 = vpop.permute.xlu0 %1565
  %v1568 = vmul.f32 %v1558, %v1566
  %1570 = vrot.lane.b32.xlu0 %v1568, 32
  %v1571 = vpop.permute.xlu0 %1570
  %v1573 = vadd.f32 %v1563, %v1571
  %v1574 = vtanh.pop %v1573
  %1576 = vrot.lane.b32.xlu0 %v1574, 64
  %v1577 = vpop.permute.xlu0 %1576
  %v1579 = vmul.f32 %v1558, %v1577
  %1581 = vrot.lane.b32.xlu0 %v1579, 32
  %v1582 = vpop.permute.xlu0 %1581
  %1584 = vst.msk [vmem:[#allocation2 + $0x10] sm:$0x3] %vm263, %v1582
  %v1585 = vpack.c.bf16 %v1498, %v1498
  %v1587 = vrot.slane %v1585, 2
  %1588 = vrot.lane.b32.xlu0 %v1587, 32
  %v1589 = vpop.permute.xlu0 %1588
  %v1591 = vsel %vm63, %v1589, 0
  %1593 = vmatprep.subr.bf16.mxu0 0
  %1594 = vmatpush1.bf16.msra.mxu0 %v40
  %1595 = vmatprep.subr.bf16.mxu0 0
  %1596 = vmatpush1.bf16.msra.mxu0 %v41
  %1597 = vmatprep.subr.bf16.mxu0 0
  %1598 = vmatpush1.bf16.msra.mxu0 0
  %1599 = vmatprep.subr.bf16.mxu0 0
  %1600 = vmatpush1.bf16.msra.mxu0 0
  %1601 = vmatprep.subr.bf16.mxu0 0
  %1602 = vmatpush1.bf16.msra.mxu0 0
  %1603 = vmatprep.subr.bf16.mxu0 0
  %1604 = vmatpush1.bf16.msra.mxu0 0
  %1605 = vmatprep.subr.bf16.mxu0 0
  %1606 = vmatpush1.bf16.msra.mxu0 0
  %1607 = vmatprep.subr.bf16.mxu0 0
  %1608 = vmatpush1.bf16.msra.mxu0 0
  %1609 = vmatprep.subr.bf16.mxu0 0
  %1610 = vmatpush1.bf16.msra.mxu0 0
  %1611 = vmatprep.subr.bf16.mxu0 0
  %1612 = vmatpush1.bf16.msra.mxu0 0
  %1613 = vmatprep.subr.bf16.mxu0 0
  %1614 = vmatpush1.bf16.msra.mxu0 0
  %1615 = vmatprep.subr.bf16.mxu0 0
  %1616 = vmatpush1.bf16.msra.mxu0 0
  %1617 = vmatprep.subr.bf16.mxu0 0
  %1618 = vmatpush1.bf16.msra.mxu0 0
  %1619 = vmatprep.subr.bf16.mxu0 0
  %1620 = vmatpush1.bf16.msra.mxu0 0
  %1621 = vmatprep.subr.bf16.mxu0 0
  %1622 = vmatpush1.bf16.msra.mxu0 0
  %1623 = vmatprep.subr.bf16.mxu0 0
  %1624 = vmatpush1.bf16.msra.mxu0 0
  %1625 = vmatprep.mubr.bf16.mxu0 0
  %1626 = vmatmul.mubr.bf16.gmra.mrb[0].mxu0 %v1591
  %v1627 = vpop.f32.mrb[0].mxu0
  %v1628 = vadd.f32 0.0, %v1627
  %v1629 = vpop.f32.mrb[0].mxu0
  %v1630 = vpop.f32.mrb[0].mxu0
  %v1631 = vpop.f32.mrb[0].mxu0
  %1632 = vdwg.mxu0
  %v1634 = vrot.slane %v1628, 6
  %v1636 = vadd.f32 %v177, %v1634
  %v1637 = vxor.u32 %v1636, 2147483648
  %v1638 = vmul.f32 %v1637, 1.442695
  %v1639 = vpow.pop %v1638
  %v1640 = vadd.f32 %v1639, 1.0
  %v1641 = vrcp.pop %v1640
  %v1642 = vmul.f32 1.0, %v1641
  %v1643 = vtanh.pop %v1636
  %v1645 = vrot.slane %v1492, 2
  %v1647 = vmul.f32 %v1642, %v1645
  %1649 = vrot.lane.b32.xlu0 %v1643, 64
  %v1650 = vpop.permute.xlu0 %1649
  %v1652 = vmul.f32 %v1642, %v1650
  %1654 = vrot.lane.b32.xlu0 %v1652, 32
  %v1655 = vpop.permute.xlu0 %1654
  %v1657 = vadd.f32 %v1647, %v1655
  %v1658 = vtanh.pop %v1657
  %1660 = vrot.lane.b32.xlu0 %v1658, 64
  %v1661 = vpop.permute.xlu0 %1660
  %v1663 = vmul.f32 %v1642, %v1661
  %1665 = vrot.lane.b32.xlu0 %v1663, 32
  %v1666 = vpop.permute.xlu0 %1665
  %1668 = vst.msk [vmem:[#allocation3] sm:$0xc] %vm337, %v1666
  %v1669 = vpack.c.bf16 %v1579, %v1579
  %1671 = vrot.lane.b32.xlu0 %v1669, 32
  %v1672 = vpop.permute.xlu0 %1671
  %v1674 = vsel %vm63, %v1672, 0
  %1676 = vmatprep.subr.bf16.mxu0 0
  %1677 = vmatpush1.bf16.msra.mxu0 %v34
  %1678 = vmatprep.subr.bf16.mxu0 0
  %1679 = vmatpush1.bf16.msra.mxu0 %v35
  %1680 = vmatprep.subr.bf16.mxu0 0
  %1681 = vmatpush1.bf16.msra.mxu0 0
  %1682 = vmatprep.subr.bf16.mxu0 0
  %1683 = vmatpush1.bf16.msra.mxu0 0
  %1684 = vmatprep.subr.bf16.mxu0 0
  %1685 = vmatpush1.bf16.msra.mxu0 0
  %1686 = vmatprep.subr.bf16.mxu0 0
  %1687 = vmatpush1.bf16.msra.mxu0 0
  %1688 = vmatprep.subr.bf16.mxu0 0
  %1689 = vmatpush1.bf16.msra.mxu0 0
  %1690 = vmatprep.subr.bf16.mxu0 0
  %1691 = vmatpush1.bf16.msra.mxu0 0
  %1692 = vmatprep.subr.bf16.mxu0 0
  %1693 = vmatpush1.bf16.msra.mxu0 0
  %1694 = vmatprep.subr.bf16.mxu0 0
  %1695 = vmatpush1.bf16.msra.mxu0 0
  %1696 = vmatprep.subr.bf16.mxu0 0
  %1697 = vmatpush1.bf16.msra.mxu0 0
  %1698 = vmatprep.subr.bf16.mxu0 0
  %1699 = vmatpush1.bf16.msra.mxu0 0
  %1700 = vmatprep.subr.bf16.mxu0 0
  %1701 = vmatpush1.bf16.msra.mxu0 0
  %1702 = vmatprep.subr.bf16.mxu0 0
  %1703 = vmatpush1.bf16.msra.mxu0 0
  %1704 = vmatprep.subr.bf16.mxu0 0
  %1705 = vmatpush1.bf16.msra.mxu0 0
  %1706 = vmatprep.subr.bf16.mxu0 0
  %1707 = vmatpush1.bf16.msra.mxu0 0
  %1708 = vmatprep.mubr.bf16.mxu0 0
  %1709 = vmatmul.mubr.bf16.gmra.mrb[0].mxu0 %v1674
  %v1710 = vpop.f32.mrb[0].mxu0
  %v1711 = vadd.f32 0.0, %v1710
  %v1712 = vpop.f32.mrb[0].mxu0
  %v1713 = vpop.f32.mrb[0].mxu0
  %v1714 = vpop.f32.mrb[0].mxu0
  %1715 = vdwg.mxu0
  %v1717 = vrot.slane %v1711, 6
  %v1719 = vadd.f32 %v185, %v1717
  %v1720 = vxor.u32 %v1719, 2147483648
  %v1721 = vmul.f32 %v1720, 1.442695
  %v1722 = vpow.pop %v1721
  %v1723 = vadd.f32 %v1722, 1.0
  %v1724 = vrcp.pop %v1723
  %v1725 = vmul.f32 1.0, %v1724
  %v1726 = vtanh.pop %v1719
  %v1728 = vrot.slane %v1573, 6
  %v1730 = vmul.f32 %v1725, %v1728
  %1732 = vrot.lane.b32.xlu0 %v1726, 64
  %v1733 = vpop.permute.xlu0 %1732
  %v1735 = vmul.f32 %v1725, %v1733
  %1737 = vrot.lane.b32.xlu0 %v1735, 32
  %v1738 = vpop.permute.xlu0 %1737
  %v1740 = vadd.f32 %v1730, %v1738
  %v1741 = vtanh.pop %v1740
  %1743 = vrot.lane.b32.xlu0 %v1741, 64
  %v1744 = vpop.permute.xlu0 %1743
  %v1746 = vmul.f32 %v1725, %v1744
  %1748 = vrot.lane.b32.xlu0 %v1746, 32
  %v1749 = vpop.permute.xlu0 %1748
  %1751 = vst.msk [vmem:[#allocation2 + $0x10] sm:$0xc] %vm337, %v1749
  %v1752 = vpack.c.bf16 %v1663, %v1663
  %v1754 = vrot.slane %v1752, 1
  %1755 = vrot.lane.b32.xlu0 %v1754, 32
  %v1756 = vpop.permute.xlu0 %1755
  %v1758 = vsel %vm63, %v1756, 0
  %1760 = vmatprep.subr.bf16.mxu0 0
  %1761 = vmatpush1.bf16.msra.mxu0 %v40
  %1762 = vmatprep.subr.bf16.mxu0 0
  %1763 = vmatpush1.bf16.msra.mxu0 %v41
  %1764 = vmatprep.subr.bf16.mxu0 0
  %1765 = vmatpush1.bf16.msra.mxu0 0
  %1766 = vmatprep.subr.bf16.mxu0 0
  %1767 = vmatpush1.bf16.msra.mxu0 0
  %1768 = vmatprep.subr.bf16.mxu0 0
  %1769 = vmatpush1.bf16.msra.mxu0 0
  %1770 = vmatprep.subr.bf16.mxu0 0
  %1771 = vmatpush1.bf16.msra.mxu0 0
  %1772 = vmatprep.subr.bf16.mxu0 0
  %1773 = vmatpush1.bf16.msra.mxu0 0
  %1774 = vmatprep.subr.bf16.mxu0 0
  %1775 = vmatpush1.bf16.msra.mxu0 0
  %1776 = vmatprep.subr.bf16.mxu0 0
  %1777 = vmatpush1.bf16.msra.mxu0 0
  %1778 = vmatprep.subr.bf16.mxu0 0
  %1779 = vmatpush1.bf16.msra.mxu0 0
  %1780 = vmatprep.subr.bf16.mxu0 0
  %1781 = vmatpush1.bf16.msra.mxu0 0
  %1782 = vmatprep.subr.bf16.mxu0 0
  %1783 = vmatpush1.bf16.msra.mxu0 0
  %1784 = vmatprep.subr.bf16.mxu0 0
  %1785 = vmatpush1.bf16.msra.mxu0 0
  %1786 = vmatprep.subr.bf16.mxu0 0
  %1787 = vmatpush1.bf16.msra.mxu0 0
  %1788 = vmatprep.subr.bf16.mxu0 0
  %1789 = vmatpush1.bf16.msra.mxu0 0
  %1790 = vmatprep.subr.bf16.mxu0 0
  %1791 = vmatpush1.bf16.msra.mxu0 0
  %1792 = vmatprep.mubr.bf16.mxu0 0
  %1793 = vmatmul.mubr.bf16.gmra.mrb[0].mxu0 %v1758
  %v1794 = vpop.f32.mrb[0].mxu0
  %v1795 = vadd.f32 0.0, %v1794
  %v1796 = vpop.f32.mrb[0].mxu0
  %v1797 = vpop.f32.mrb[0].mxu0
  %v1798 = vpop.f32.mrb[0].mxu0
  %1799 = vdwg.mxu0
  %v1800 = vadd.f32 %v177, %v1795
  %v1801 = vxor.u32 %v1800, 2147483648
  %v1802 = vmul.f32 %v1801, 1.442695
  %v1803 = vpow.pop %v1802
  %v1804 = vadd.f32 %v1803, 1.0
  %v1805 = vrcp.pop %v1804
  %v1806 = vmul.f32 1.0, %v1805
  %v1807 = vtanh.pop %v1800
  %v1809 = vrot.slane %v1657, 2
  %v1811 = vmul.f32 %v1806, %v1809
  %1813 = vrot.lane.b32.xlu0 %v1807, 64
  %v1814 = vpop.permute.xlu0 %1813
  %v1816 = vmul.f32 %v1806, %v1814
  %1818 = vrot.lane.b32.xlu0 %v1816, 32
  %v1819 = vpop.permute.xlu0 %1818
  %v1821 = vadd.f32 %v1811, %v1819
  %v1822 = vtanh.pop %v1821
  %1824 = vrot.lane.b32.xlu0 %v1822, 64
  %v1825 = vpop.permute.xlu0 %1824
  %v1827 = vmul.f32 %v1806, %v1825
  %1829 = vrot.lane.b32.xlu0 %v1827, 32
  %v1830 = vpop.permute.xlu0 %1829
  %1832 = vst.msk [vmem:[#allocation3] sm:$0x3] %vm263, %v1830
  %v1833 = vld [vmem:[#allocation2] sm:$0xff]
  %v1834 = vld [vmem:[#allocation2 + $0x8] sm:$0xff]
  %v1835 = vld [vmem:[#allocation2 + $0x10] sm:$0xf]
  %v1836 = vpack.c.bf16 %v1834, %v1833
  %v1837 = vpack.c.bf16 %v1835, %v1835
  %v1838 = vld [vmem:[#allocation3] sm:$0xff]
  %v1839 = vld [vmem:[#allocation3 + $0x8] sm:$0xff]
  %v1840 = vld [vmem:[#allocation3 + $0x10] sm:$0xf]
  %v1841 = vpack.c.bf16 %v1839, %v1838
  %v1842 = vpack.c.bf16 %v1840, %v1840
  %v1844 = vsel %vm63, %v1841, 0
  %v1847 = vsel %vm63, %v1842, 0
  %1849 = vmatprep.subr.bf16.mxu0 0
  %1850 = vmatpush1.bf16.msra.mxu0 %v52
  %1851 = vmatprep.subr.bf16.mxu0 0
  %1852 = vmatpush1.bf16.msra.mxu0 %v53
  %1853 = vmatprep.subr.bf16.mxu0 0
  %1854 = vmatpush1.bf16.msra.mxu0 0
  %1855 = vmatprep.subr.bf16.mxu0 0
  %1856 = vmatpush1.bf16.msra.mxu0 0
  %1857 = vmatprep.subr.bf16.mxu0 0
  %1858 = vmatpush1.bf16.msra.mxu0 0
  %1859 = vmatprep.subr.bf16.mxu0 0
  %1860 = vmatpush1.bf16.msra.mxu0 0
  %1861 = vmatprep.subr.bf16.mxu0 0
  %1862 = vmatpush1.bf16.msra.mxu0 0
  %1863 = vmatprep.subr.bf16.mxu0 0
  %1864 = vmatpush1.bf16.msra.mxu0 0
  %1865 = vmatprep.subr.bf16.mxu0 0
  %1866 = vmatpush1.bf16.msra.mxu0 0
  %1867 = vmatprep.subr.bf16.mxu0 0
  %1868 = vmatpush1.bf16.msra.mxu0 0
  %1869 = vmatprep.subr.bf16.mxu0 0
  %1870 = vmatpush1.bf16.msra.mxu0 0
  %1871 = vmatprep.subr.bf16.mxu0 0
  %1872 = vmatpush1.bf16.msra.mxu0 0
  %1873 = vmatprep.subr.bf16.mxu0 0
  %1874 = vmatpush1.bf16.msra.mxu0 0
  %1875 = vmatprep.subr.bf16.mxu0 0
  %1876 = vmatpush1.bf16.msra.mxu0 0
  %1877 = vmatprep.subr.bf16.mxu0 0
  %1878 = vmatpush1.bf16.msra.mxu0 0
  %1879 = vmatprep.subr.bf16.mxu0 0
  %1880 = vmatpush1.bf16.msra.mxu0 0
  %1881 = vmatprep.mubr.bf16.mxu0 0
  %1882 = vmatmul.mubr.bf16.gmra.mrb[0].mxu0 %v1844
  %v1883 = vpop.f32.mrb[0].mxu0
  %v1884 = vadd.f32 0.0, %v1883
  %v1885 = vpop.f32.mrb[0].mxu0
  %v1886 = vpop.f32.mrb[0].mxu0
  %v1887 = vadd.f32 0.0, %v1886
  %v1888 = vpop.f32.mrb[0].mxu0
  %1889 = vmatprep.mubr.bf16.mxu0 0
  %1890 = vmatmul.mubr.bf16.gmra.mrb[0].mxu0 %v1847
  %v1891 = vpop.f32.mrb[0].mxu0
  %v1892 = vadd.f32 0.0, %v1891
  %v1893 = vpop.f32.mrb[0].mxu0
  %v1894 = vpop.f32.mrb[0].mxu0
  %v1895 = vpop.f32.mrb[0].mxu0
  %1896 = vdwg.mxu0
  %v1898 = vsel %vm63, %v1836, 0
  %v1901 = vsel %vm63, %v1837, 0
  %1903 = vmatprep.subr.bf16.mxu0 0
  %1904 = vmatpush1.bf16.msra.mxu0 %v46
  %1905 = vmatprep.subr.bf16.mxu0 0
  %1906 = vmatpush1.bf16.msra.mxu0 %v47
  %1907 = vmatprep.subr.bf16.mxu0 0
  %1908 = vmatpush1.bf16.msra.mxu0 0
  %1909 = vmatprep.subr.bf16.mxu0 0
  %1910 = vmatpush1.bf16.msra.mxu0 0
  %1911 = vmatprep.subr.bf16.mxu0 0
  %1912 = vmatpush1.bf16.msra.mxu0 0
  %1913 = vmatprep.subr.bf16.mxu0 0
  %1914 = vmatpush1.bf16.msra.mxu0 0
  %1915 = vmatprep.subr.bf16.mxu0 0
  %1916 = vmatpush1.bf16.msra.mxu0 0
  %1917 = vmatprep.subr.bf16.mxu0 0
  %1918 = vmatpush1.bf16.msra.mxu0 0
  %1919 = vmatprep.subr.bf16.mxu0 0
  %1920 = vmatpush1.bf16.msra.mxu0 0
  %1921 = vmatprep.subr.bf16.mxu0 0
  %1922 = vmatpush1.bf16.msra.mxu0 0
  %1923 = vmatprep.subr.bf16.mxu0 0
  %1924 = vmatpush1.bf16.msra.mxu0 0
  %1925 = vmatprep.subr.bf16.mxu0 0
  %1926 = vmatpush1.bf16.msra.mxu0 0
  %1927 = vmatprep.subr.bf16.mxu0 0
  %1928 = vmatpush1.bf16.msra.mxu0 0
  %1929 = vmatprep.subr.bf16.mxu0 0
  %1930 = vmatpush1.bf16.msra.mxu0 0
  %1931 = vmatprep.subr.bf16.mxu0 0
  %1932 = vmatpush1.bf16.msra.mxu0 0
  %1933 = vmatprep.subr.bf16.mxu0 0
  %1934 = vmatpush1.bf16.msra.mxu0 0
  %1935 = vmatprep.mubr.bf16.mxu0 0
  %1936 = vmatmul.mubr.bf16.gmra.mrb[0].mxu0 %v1898
  %v1937 = vpop.f32.mrb[0].mxu0
  %v1938 = vadd.f32 %v1884, %v1937
  %v1939 = vpop.f32.mrb[0].mxu0
  %v1940 = vpop.f32.mrb[0].mxu0
  %v1941 = vadd.f32 %v1887, %v1940
  %v1942 = vpop.f32.mrb[0].mxu0
  %1943 = vmatprep.mubr.bf16.mxu0 0
  %1944 = vmatmul.mubr.bf16.gmra.mrb[0].mxu0 %v1901
  %v1945 = vpop.f32.mrb[0].mxu0
  %v1946 = vadd.f32 %v1892, %v1945
  %v1947 = vpop.f32.mrb[0].mxu0
  %v1948 = vpop.f32.mrb[0].mxu0
  %v1949 = vpop.f32.mrb[0].mxu0
  %1950 = vdwg.mxu0
  %v1951 = vadd.f32 %v1938, %v57
  %v1952 = vadd.f32 %v1941, %v57
  %v1953 = vadd.f32 %v1946, %v57
  %1954 = vst.msk [vmem:[%s2] sm:$0xff] %vm63, %v1951
  %1955 = vst.msk [vmem:[%s2 + $0x8] sm:$0xff] %vm63, %v1952
  %vm1956 = vcmask 257024
  %1957 = vst.msk [vmem:[%s2 + $0x10] sm:$0xf] %vm1956, %v1953
  // Predicated region
  $region10: #{_forward_padded.1} parent=0 // pred_check
    _
  $region11: #{_forward_padded.1} parent=0 // pred_check_branch
    %1959 = sbr.rel (0) target = $region13
  $region12: #{_forward_padded.1} parent=0 // pred_region
    _
  $region13: #{_forward_padded.1} parent=0 // pred_fallthru
    _
  // Predicated region
  $region14: #{_forward_padded.1} parent=0 // pred_check
    _
  $region15: #{_forward_padded.1} parent=0 // pred_check_branch
    %1961 = sbr.rel (0) target = $region17
  $region16: #{_forward_padded.1} parent=0 // pred_region
    _
  $region17: #{_forward_padded.1} parent=0 // pred_fallthru
    _

</llo_original>
